<compile_context>
chip_gen: v7x
topology: tpu7x:2x2x1
jax: 0.10.0
libtpu: 0.0.40
codegen_flags: <defaults>
</compile_context>

<pallas_src>
import functools

import jax
import jax.numpy as jnp
import numpy as np
from jax import lax
from jax.experimental import pallas as pl
from jax.experimental.pallas import tpu as pltpu


# ---------------------------------------------------------------------------
# Kernel
# ---------------------------------------------------------------------------
def _actor_critic_kernel(
    x_ref,                     # (tile_b, input_dim)  bf16
    w1_ref, b1_ref,            # feature Linear(input_dim, 256)   w: bf16, b: f32
    w2_ref, b2_ref,            # feature Linear(256, 256)
    wh1_ref, bh1_ref,          # fused [actor|critic] head-1 Linear(256, 256)
    wh2_ref, bh2_ref,          # fused block-diag head-2 Linear(256, out_w)
    out_ref,                   # (tile_b, out_w) f32: [probs | value | 0-pad]
    *, num_actions,
):
    cdt = w1_ref.dtype  # MXU operand dtype (bf16)

    # feature network: Linear -> ReLU -> Linear -> ReLU (f32 accumulate)
    h = jnp.dot(x_ref[...], w1_ref[...],
                preferred_element_type=jnp.float32) + b1_ref[...]
    h = jnp.maximum(h, 0.0)
    h = jnp.dot(h.astype(cdt), w2_ref[...],
                preferred_element_type=jnp.float32) + b2_ref[...]
    h = jnp.maximum(h, 0.0)

    # fused actor/critic hidden layer: one (256,256) matmul, then ReLU
    ac = jnp.dot(h.astype(cdt), wh1_ref[...],
                 preferred_element_type=jnp.float32) + bh1_ref[...]
    ac = jnp.maximum(ac, 0.0)

    # fused block-diagonal output layer -> lane-dense slab:
    #   cols [0, num_actions)      = actor logits
    #   col  num_actions           = critic value
    #   cols (num_actions, out_w)  = zeros
    slab = jnp.dot(ac.astype(cdt), wh2_ref[...],
                   preferred_element_type=jnp.float32) + bh2_ref[...]

    # masked, numerically stable softmax over the logit lanes only
    lane = lax.broadcasted_iota(jnp.int32, slab.shape, 1)
    is_logit = lane < num_actions
    logits = jnp.where(is_logit, slab, jnp.float32(-1e30))
    m = jnp.max(logits, axis=-1, keepdims=True)
    e = jnp.exp(logits - m)                       # padded lanes -> 0
    denom = jnp.sum(e, axis=-1, keepdims=True)
    probs = e * pl.reciprocal(denom, approx=False)

    out_ref[...] = jnp.where(
        is_logit, probs, jnp.where(lane == num_actions, slab, 0.0))


# ---------------------------------------------------------------------------
# Parameter packing: fuse actor/critic heads, cast weights to bf16
# ---------------------------------------------------------------------------
def pack_params(p, compute_dtype=jnp.bfloat16):
    """Takes f32 params (weights stored (in, out)); returns packed kernel args."""
    num_actions = p["wa2"].shape[1]
    hid1 = p["wa1"].shape[1]                       # 128
    out_w = ((num_actions + 1 + 127) // 128) * 128  # lane-dense output width

    w1 = p["w1"].astype(compute_dtype)
    b1 = p["b1"].astype(jnp.float32)
    w2 = p["w2"].astype(compute_dtype)
    b2 = p["b2"].astype(jnp.float32)

    # fused head-1: [actor | critic] -> (256, 256)
    wh1 = jnp.concatenate([p["wa1"], p["wc1"]], axis=1).astype(compute_dtype)
    bh1 = jnp.concatenate([p["ba1"], p["bc1"]], axis=1).astype(jnp.float32)

    # fused block-diagonal, lane-padded head-2 -> (256, out_w)
    wh2 = jnp.zeros((2 * hid1, out_w), jnp.float32)
    wh2 = wh2.at[:hid1, :num_actions].set(p["wa2"])
    wh2 = wh2.at[hid1:, num_actions:num_actions + 1].set(p["wc2"])
    bh2 = jnp.zeros((1, out_w), jnp.float32)
    bh2 = bh2.at[:, :num_actions].set(p["ba2"])
    bh2 = bh2.at[:, num_actions:num_actions + 1].set(p["bc2"])
    wh2 = wh2.astype(compute_dtype)

    args = (w1, b1, w2, b2, wh1, bh1, wh2, bh2)
    return args, num_actions, out_w


# ---------------------------------------------------------------------------
# Wrapper
# ---------------------------------------------------------------------------
def actor_critic_forward(x, packed, *, block_rows=256,
                         compute_dtype=jnp.bfloat16):
    """x: (B, input_dim) f32. Returns (action_probs (B, A), value (B, 1)) f32."""
    w_args, num_actions, out_w = packed
    B, input_dim = x.shape

    # Choose a batch tile (rows must be a multiple of 8); pad the batch to it.
    if B >= block_rows:
        tile_b = block_rows
    else:
        tile_b = max(8, ((B + 7) // 8) * 8)
    b_pad = ((B + tile_b - 1) // tile_b) * tile_b
    if b_pad != B:
        x = jnp.pad(x, ((0, b_pad - B), (0, 0)))
    x = x.astype(compute_dtype)
    n_tiles = b_pad // tile_b

    kernel = functools.partial(_actor_critic_kernel, num_actions=num_actions)

    def const_spec(a):  # weight blocks: constant block index -> VMEM resident
        return pl.BlockSpec(a.shape, lambda i: (0,) * a.ndim)

    out = pl.pallas_call(
        kernel,
        out_shape=jax.ShapeDtypeStruct((b_pad, out_w), jnp.float32),
        grid=(n_tiles,),
        in_specs=[pl.BlockSpec((tile_b, input_dim), lambda i: (i, 0))]
                 + [const_spec(a) for a in w_args],
        out_specs=pl.BlockSpec((tile_b, out_w), lambda i: (i, 0)),
        compiler_params=pltpu.CompilerParams(
            dimension_semantics=("parallel",)),
    )(x, *w_args)

    probs = out[:B, :num_actions]
    value = out[:B, num_actions:num_actions + 1]
    return probs, value


# ---------------------------------------------------------------------------
# Init + pure-JAX reference (PyTorch forward semantics, f32)
# ---------------------------------------------------------------------------
def init_params(key, input_dim, num_actions):
    """PyTorch-style uniform(+/- 1/sqrt(fan_in)); weights stored (in, out)."""
    def linear(k, fan_in, fan_out):
        kw, kb = jax.random.split(k)
        bound = 1.0 / np.sqrt(fan_in)
        w = jax.random.uniform(kw, (fan_in, fan_out), jnp.float32, -bound, bound)
        b = jax.random.uniform(kb, (1, fan_out), jnp.float32, -bound, bound)
        return w, b

    keys = jax.random.split(key, 6)
    w1, b1 = linear(keys[0], input_dim, 256)
    w2, b2 = linear(keys[1], 256, 256)
    wa1, ba1 = linear(keys[2], 256, 128)
    wa2, ba2 = linear(keys[3], 128, num_actions)
    wc1, bc1 = linear(keys[4], 256, 128)
    wc2, bc2 = linear(keys[5], 128, 1)
    return dict(w1=w1, b1=b1, w2=w2, b2=b2,
                wa1=wa1, ba1=ba1, wa2=wa2, ba2=ba2,
                wc1=wc1, bc1=bc1, wc2=wc2, bc2=bc2)


def reference_forward(x, p):
    h = jnp.maximum(x @ p["w1"] + p["b1"], 0.0)
    h = jnp.maximum(h @ p["w2"] + p["b2"], 0.0)
    a = jnp.maximum(h @ p["wa1"] + p["ba1"], 0.0)
    probs = jax.nn.softmax(a @ p["wa2"] + p["ba2"], axis=-1)
    c = jnp.maximum(h @ p["wc1"] + p["bc1"], 0.0)
    value = c @ p["wc2"] + p["bc2"]
    return probs, value


# ---------------------------------------------------------------------------
if __name__ == "__main__":
    key = jax.random.PRNGKey(0)
    k_params, k_x1, k_x2 = jax.random.split(key, 3)

    input_dim = 32
    num_actions = 8

    params = init_params(k_params, input_dim, num_actions)
    packed = pack_params(params)

    # bf16 MXU operands -> compare against the f32 reference at loose tolerance.
    RTOL, ATOL = 5e-2, 2e-2

    # Case 1: batch large enough to exercise the grid + padding (300 -> 2x256).
    x1 = jax.random.normal(k_x1, (300, input_dim), jnp.float32)
    probs1, value1 = actor_critic_forward(x1, packed, block_rows=256)
    probs1 = jax.block_until_ready(probs1)
    value1 = jax.block_until_ready(value1)
    pr1, vr1 = reference_forward(x1, params)
    np.testing.assert_allclose(np.asarray(probs1), np.asarray(pr1),
                               rtol=RTOL, atol=ATOL)
    np.testing.assert_allclose(np.asarray(value1), np.asarray(vr1),
                               rtol=RTOL, atol=ATOL)
    np.testing.assert_allclose(np.asarray(probs1).sum(-1), 1.0,
                               rtol=1e-5, atol=1e-5)
    assert probs1.shape == (300, num_actions) and value1.shape == (300, 1)

    # Case 2: tiny batch (get_action-style), exercises the B < tile path.
    x2 = jax.random.normal(k_x2, (4, input_dim), jnp.float32)
    probs2, value2 = actor_critic_forward(x2, packed)
    probs2 = jax.block_until_ready(probs2)
    value2 = jax.block_until_ready(value2)
    pr2, vr2 = reference_forward(x2, params)
    np.testing.assert_allclose(np.asarray(probs2), np.asarray(pr2),
                               rtol=RTOL, atol=ATOL)
    np.testing.assert_allclose(np.asarray(value2), np.asarray(vr2),
                               rtol=RTOL, atol=ATOL)
    np.testing.assert_allclose(np.asarray(probs2).sum(-1), 1.0,
                               rtol=1e-5, atol=1e-5)
    assert probs2.shape == (4, num_actions) and value2.shape == (4, 1)

    print("KERNEL_OK")
</pallas_src>

<mosaic_0001>
module attributes {stable_mosaic.version = 11 : i64} {
  func.func @_actor_critic_kernel(%arg0: i32, %arg1: memref<256x32xbf16, #tpu.memory_space<vmem>>, %arg2: memref<32x256xbf16, #tpu.memory_space<vmem>>, %arg3: memref<1x256xf32, #tpu.memory_space<vmem>>, %arg4: memref<256x256xbf16, #tpu.memory_space<vmem>>, %arg5: memref<1x256xf32, #tpu.memory_space<vmem>>, %arg6: memref<256x256xbf16, #tpu.memory_space<vmem>>, %arg7: memref<1x256xf32, #tpu.memory_space<vmem>>, %arg8: memref<256x128xbf16, #tpu.memory_space<vmem>>, %arg9: memref<1x128xf32, #tpu.memory_space<vmem>>, %arg10: memref<256x128xf32, #tpu.memory_space<vmem>>) attributes {dimension_semantics = [#tpu.dimension_semantics<parallel>], iteration_bounds = array<i64: 2>, scalar_prefetch = 0 : i64, scratch_operands = 0 : i64, tpu.core_type = #tpu.core_type<tc>, window_params = [{transform_indices = @transform_0, window_bounds = array<i64: 256, 32>}, {pipeline_mode = #tpu.pipeline_mode<synchronous>, transform_indices = @transform_1, window_bounds = array<i64: 32, 256>}, {pipeline_mode = #tpu.pipeline_mode<synchronous>, transform_indices = @transform_2, window_bounds = array<i64: 1, 256>}, {pipeline_mode = #tpu.pipeline_mode<synchronous>, transform_indices = @transform_3, window_bounds = array<i64: 256, 256>}, {pipeline_mode = #tpu.pipeline_mode<synchronous>, transform_indices = @transform_4, window_bounds = array<i64: 1, 256>}, {pipeline_mode = #tpu.pipeline_mode<synchronous>, transform_indices = @transform_5, window_bounds = array<i64: 256, 256>}, {pipeline_mode = #tpu.pipeline_mode<synchronous>, transform_indices = @transform_6, window_bounds = array<i64: 1, 256>}, {pipeline_mode = #tpu.pipeline_mode<synchronous>, transform_indices = @transform_7, window_bounds = array<i64: 256, 128>}, {pipeline_mode = #tpu.pipeline_mode<synchronous>, transform_indices = @transform_8, window_bounds = array<i64: 1, 128>}, {transform_indices = @transform_9, window_bounds = array<i64: 256, 128>}]} {
    %c0 = arith.constant 0 : index
    %c0_0 = arith.constant 0 : index
    %0 = vector.load %arg1[%c0, %c0_0] : memref<256x32xbf16, #tpu.memory_space<vmem>>, vector<256x32xbf16>
    %c0_1 = arith.constant 0 : index
    %c0_2 = arith.constant 0 : index
    %1 = vector.load %arg2[%c0_1, %c0_2] : memref<32x256xbf16, #tpu.memory_space<vmem>>, vector<32x256xbf16>
    %cst = arith.constant dense<0.000000e+00> : vector<256x256xf32>
    %2 = tpu.matmul %0, %1, %cst {dimension_numbers = #tpu.dot_dimension_numbers<[1], [0], [0], [1], [0, 0, 1, 1], [], []>} : vector<256x32xbf16>, vector<32x256xbf16>, vector<256x256xf32> -> vector<256x256xf32>
    %c0_3 = arith.constant 0 : index
    %c0_4 = arith.constant 0 : index
    %3 = vector.load %arg3[%c0_3, %c0_4] : memref<1x256xf32, #tpu.memory_space<vmem>>, vector<1x256xf32>
    %4 = vector.broadcast %3 : vector<1x256xf32> to vector<256x256xf32>
    %5 = arith.addf %2, %4 : vector<256x256xf32>
    %cst_5 = arith.constant 0.000000e+00 : f32
    %6 = vector.broadcast %cst_5 : f32 to vector<256x256xf32>
    %7 = arith.maximumf %5, %6 : vector<256x256xf32>
    %8 = arith.truncf %7 : vector<256x256xf32> to vector<256x256xbf16>
    %c0_6 = arith.constant 0 : index
    %c0_7 = arith.constant 0 : index
    %9 = vector.load %arg4[%c0_6, %c0_7] : memref<256x256xbf16, #tpu.memory_space<vmem>>, vector<256x256xbf16>
    %cst_8 = arith.constant dense<0.000000e+00> : vector<256x256xf32>
    %10 = tpu.matmul %8, %9, %cst_8 {dimension_numbers = #tpu.dot_dimension_numbers<[1], [0], [0], [1], [0, 0, 1, 1], [], []>} : vector<256x256xbf16>, vector<256x256xbf16>, vector<256x256xf32> -> vector<256x256xf32>
    %c0_9 = arith.constant 0 : index
    %c0_10 = arith.constant 0 : index
    %11 = vector.load %arg5[%c0_9, %c0_10] : memref<1x256xf32, #tpu.memory_space<vmem>>, vector<1x256xf32>
    %12 = vector.broadcast %11 : vector<1x256xf32> to vector<256x256xf32>
    %13 = arith.addf %10, %12 : vector<256x256xf32>
    %cst_11 = arith.constant 0.000000e+00 : f32
    %14 = vector.broadcast %cst_11 : f32 to vector<256x256xf32>
    %15 = arith.maximumf %13, %14 : vector<256x256xf32>
    %16 = arith.truncf %15 : vector<256x256xf32> to vector<256x256xbf16>
    %c0_12 = arith.constant 0 : index
    %c0_13 = arith.constant 0 : index
    %17 = vector.load %arg6[%c0_12, %c0_13] : memref<256x256xbf16, #tpu.memory_space<vmem>>, vector<256x256xbf16>
    %cst_14 = arith.constant dense<0.000000e+00> : vector<256x256xf32>
    %18 = tpu.matmul %16, %17, %cst_14 {dimension_numbers = #tpu.dot_dimension_numbers<[1], [0], [0], [1], [0, 0, 1, 1], [], []>} : vector<256x256xbf16>, vector<256x256xbf16>, vector<256x256xf32> -> vector<256x256xf32>
    %c0_15 = arith.constant 0 : index
    %c0_16 = arith.constant 0 : index
    %19 = vector.load %arg7[%c0_15, %c0_16] : memref<1x256xf32, #tpu.memory_space<vmem>>, vector<1x256xf32>
    %20 = vector.broadcast %19 : vector<1x256xf32> to vector<256x256xf32>
    %21 = arith.addf %18, %20 : vector<256x256xf32>
    %cst_17 = arith.constant 0.000000e+00 : f32
    %22 = vector.broadcast %cst_17 : f32 to vector<256x256xf32>
    %23 = arith.maximumf %21, %22 : vector<256x256xf32>
    %24 = arith.truncf %23 : vector<256x256xf32> to vector<256x256xbf16>
    %c0_18 = arith.constant 0 : index
    %c0_19 = arith.constant 0 : index
    %25 = vector.load %arg8[%c0_18, %c0_19] : memref<256x128xbf16, #tpu.memory_space<vmem>>, vector<256x128xbf16>
    %cst_20 = arith.constant dense<0.000000e+00> : vector<256x128xf32>
    %26 = tpu.matmul %24, %25, %cst_20 {dimension_numbers = #tpu.dot_dimension_numbers<[1], [0], [0], [1], [0, 0, 1, 1], [], []>} : vector<256x256xbf16>, vector<256x128xbf16>, vector<256x128xf32> -> vector<256x128xf32>
    %c0_21 = arith.constant 0 : index
    %c0_22 = arith.constant 0 : index
    %27 = vector.load %arg9[%c0_21, %c0_22] : memref<1x128xf32, #tpu.memory_space<vmem>>, vector<1x128xf32>
    %28 = vector.broadcast %27 : vector<1x128xf32> to vector<256x128xf32>
    %29 = arith.addf %26, %28 : vector<256x128xf32>
    %30 = tpu.iota {dimensions = array<i32: 1>} : vector<256x128xi32>
    %c8_i32 = arith.constant 8 : i32
    %31 = vector.broadcast %c8_i32 : i32 to vector<256x128xi32>
    %32 = arith.cmpi slt, %30, %31 : vector<256x128xi32>
    %cst_23 = arith.constant -1.000000e+30 : f32
    %33 = vector.broadcast %cst_23 : f32 to vector<256x128xf32>
    %34 = arith.select %32, %29, %33 : vector<256x128xi1>, vector<256x128xf32>
    %cst_24 = arith.constant dense<0xFF800000> : vector<256xf32>
    %35 = vector.multi_reduction <maximumf>, %34, %cst_24 [1] : vector<256x128xf32> to vector<256xf32>
    %36 = vector.shape_cast %35 : vector<256xf32> to vector<256x1xf32>
    %37 = vector.broadcast %36 : vector<256x1xf32> to vector<256x128xf32>
    %38 = arith.subf %34, %37 : vector<256x128xf32>
    %39 = math.exp %38 : vector<256x128xf32>
    %cst_25 = arith.constant dense<0.000000e+00> : vector<256xf32>
    %40 = vector.multi_reduction <add>, %39, %cst_25 [1] : vector<256x128xf32> to vector<256xf32>
    %41 = vector.shape_cast %40 : vector<256xf32> to vector<256x1xf32>
    %42 = tpu.reciprocal %41 : vector<256x1xf32> -> vector<256x1xf32>
    %43 = vector.broadcast %42 : vector<256x1xf32> to vector<256x128xf32>
    %44 = arith.mulf %39, %43 : vector<256x128xf32>
    %c8_i32_26 = arith.constant 8 : i32
    %45 = vector.broadcast %c8_i32_26 : i32 to vector<256x128xi32>
    %46 = arith.cmpi eq, %30, %45 : vector<256x128xi32>
    %cst_27 = arith.constant 0.000000e+00 : f32
    %47 = vector.broadcast %cst_27 : f32 to vector<256x128xf32>
    %48 = arith.select %46, %29, %47 : vector<256x128xi1>, vector<256x128xf32>
    %49 = arith.select %32, %44, %48 : vector<256x128xi1>, vector<256x128xf32>
    %c0_28 = arith.constant 0 : index
    %c0_29 = arith.constant 0 : index
    %50 = vector.load %arg10[%c0_28, %c0_29] : memref<256x128xf32, #tpu.memory_space<vmem>>, vector<256x128xf32>
    tpu.vector_store %arg10[%c0_28, %c0_29], %49 {strides = array<i32>} : memref<256x128xf32, #tpu.memory_space<vmem>>, vector<256x128xf32>,
    return
  }
  func.func @transform_0(%arg0: i32) -> (i32, i32) {
    %c0_i32 = arith.constant 0 : i32
    %c0_i32_0 = arith.constant 0 : i32
    return %arg0, %c0_i32 : i32, i32
  }
  func.func @transform_1(%arg0: i32) -> (i32, i32) {
    %c0_i32 = arith.constant 0 : i32
    %c0_i32_0 = arith.constant 0 : i32
    %c0_i32_1 = arith.constant 0 : i32
    return %c0_i32, %c0_i32_0 : i32, i32
  }
  func.func @transform_2(%arg0: i32) -> (i32, i32) {
    %c0_i32 = arith.constant 0 : i32
    %c0_i32_0 = arith.constant 0 : i32
    %c0_i32_1 = arith.constant 0 : i32
    return %c0_i32, %c0_i32_0 : i32, i32
  }
  func.func @transform_3(%arg0: i32) -> (i32, i32) {
    %c0_i32 = arith.constant 0 : i32
    %c0_i32_0 = arith.constant 0 : i32
    %c0_i32_1 = arith.constant 0 : i32
    return %c0_i32, %c0_i32_0 : i32, i32
  }
  func.func @transform_4(%arg0: i32) -> (i32, i32) {
    %c0_i32 = arith.constant 0 : i32
    %c0_i32_0 = arith.constant 0 : i32
    %c0_i32_1 = arith.constant 0 : i32
    return %c0_i32, %c0_i32_0 : i32, i32
  }
  func.func @transform_5(%arg0: i32) -> (i32, i32) {
    %c0_i32 = arith.constant 0 : i32
    %c0_i32_0 = arith.constant 0 : i32
    %c0_i32_1 = arith.constant 0 : i32
    return %c0_i32, %c0_i32_0 : i32, i32
  }
  func.func @transform_6(%arg0: i32) -> (i32, i32) {
    %c0_i32 = arith.constant 0 : i32
    %c0_i32_0 = arith.constant 0 : i32
    %c0_i32_1 = arith.constant 0 : i32
    return %c0_i32, %c0_i32_0 : i32, i32
  }
  func.func @transform_7(%arg0: i32) -> (i32, i32) {
    %c0_i32 = arith.constant 0 : i32
    %c0_i32_0 = arith.constant 0 : i32
    %c0_i32_1 = arith.constant 0 : i32
    return %c0_i32, %c0_i32_0 : i32, i32
  }
  func.func @transform_8(%arg0: i32) -> (i32, i32) {
    %c0_i32 = arith.constant 0 : i32
    %c0_i32_0 = arith.constant 0 : i32
    %c0_i32_1 = arith.constant 0 : i32
    return %c0_i32, %c0_i32_0 : i32, i32
  }
  func.func @transform_9(%arg0: i32) -> (i32, i32) {
    %c0_i32 = arith.constant 0 : i32
    %c0_i32_0 = arith.constant 0 : i32
    return %arg0, %c0_i32 : i32, i32
  }
}

</mosaic_0001>

<llo_original>
// kernel: tpu_custom_call.1
$region0: #{tpu_custom_call.1}
  #allocation0 [shape = 'u32[]', space=smem, size = 0x4, offset = 0x4, fixed_abs, tag = 'smem constant byte address 0x4 - core index']
  #allocation1 [shape = 'u32[144,128]{1,0:T(1,128)}', space=vmem, size = 0x12000, scoped, tag = 'internal scratch']
  %s0 = inlined_call_operand.vmem [shape: bf16[512,32], index: 0, kind: input, shape index: {}]
  %s1 = inlined_call_operand.vmem [shape: bf16[32,256], index: 1, kind: input, shape index: {}]
  %s2 = inlined_call_operand.vmem [shape: f32[1,256], index: 2, kind: input, shape index: {}]
  %s3 = inlined_call_operand.vmem [shape: bf16[256,256], index: 3, kind: input, shape index: {}]
  %s4 = inlined_call_operand.vmem [shape: f32[1,256], index: 4, kind: input, shape index: {}]
  %s5 = inlined_call_operand.hbm [shape: bf16[256,256], index: 5, kind: input, shape index: {}]
  %s6 = inlined_call_operand.vmem [shape: f32[1,256], index: 6, kind: input, shape index: {}]
  %s7 = inlined_call_operand.hbm [shape: bf16[256,128], index: 7, kind: input, shape index: {}]
  %s8 = inlined_call_operand.vmem [shape: f32[1,128], index: 8, kind: input, shape index: {}]
  %s9 = inlined_call_operand.hbm [shape: f32[512,128], index: 9, kind: output, shape index: {}]
  %s10 = sld [smem:[#allocation0]]
  $region77: #{tpu_custom_call.1} parent=0
    _
  %s12 = ssub.s32 1, %s10
  %s13 = scalar_select 0, %s12, %s10
  $region1: #{tpu_custom_call.1} parent=0
    #allocation2 [shape = 'u8[131072]{0}', space=vmem, size = 0x20000, scoped, tag = 'input window, operand 5, single buffered']
    #allocation3 [shape = 's32[2]{0}', space=sflag, size = 0x8, scoped, tag = 'scoped memory for tpu_custom_call.1']
    #allocation4 [shape = 's32[2]{0}', space=sflag, size = 0x8, scoped, tag = 'scoped memory for tpu_custom_call.1']
    #allocation5 [shape = 'u8[65536]{0}', space=vmem, size = 0x10000, scoped, tag = 'input window, operand 7, single buffered']
    #allocation6 [shape = 's32[1]{0}', space=sflag, size = 0x4, scoped, tag = 'scoped memory for tpu_custom_call.1']
    #allocation7 [shape = 'u8[262144]{0}', space=vmem, size = 0x40000, scoped, tag = 'output window, operand 0']
    %14 = vsyncpa [#allocation3], 0
    %15 = vsyncpa [#allocation6], 0
    %16 = vsyncpa [#allocation4], 0
    %s17 = scalar_lea.sflag [#allocation4], 1
    %18 = vsyncpa %s17, 0
    loop: start=0, step=1, limit=4
    $region2: #{tpu_custom_call.1} parent=1 // loop_pre_header
      _
    $region3: #{tpu_custom_call.1} parent=1 // loop_header
      %s20 = sphi 0, %s24
      %p21 = scmp.ge.s32.totalorder %s20, 4
      %s30 = sphi 0, %s32
      %s33 = sphi 0, %s30
      %s34 = sphi 0, %s33
      %s50 = sphi 0, %s34
      %s54 = sphi 0, %s54
      %s56 = sphi 0, %s54
      %s57 = sphi 0, %s56
      %s71 = sphi 0, %s57
      %s75 = sphi 0, %s75
      %s77 = sphi 0, %s75
      %s78 = sphi 0, %s77
      %s92 = sphi 0, %s78
      %s96 = sphi 0, %s96
      %s98 = sphi 0, %s96
      %s99 = sphi 0, %s98
      %s113 = sphi 0, %s99
      %s117 = sphi 0, %s117
      %s119 = sphi 0, %s117
      %s120 = sphi 0, %s119
      %s134 = sphi 0, %s120
      %s138 = sphi 0, %s138
      %s140 = sphi 0, %s138
      %s141 = sphi 0, %s140
      %s155 = sphi 0, %s141
      %s159 = sphi 0, %s159
      %s161 = sphi 0, %s159
      %s162 = sphi 0, %s161
      %s176 = sphi 0, %s162
      %s180 = sphi 0, %s180
      %s182 = sphi 0, %s180
      %s183 = sphi 0, %s182
      %s197 = sphi 0, %s183
      %s201 = sphi 0, %s201
      %s203 = sphi 0, %s201
      %s204 = sphi 0, %s203
      %s218 = sphi 0, %s204
      %s224 = sphi 0, %s226
      %s227 = sphi 0, %s224
      %s228 = sphi 0, %s227
      %s244 = sphi 0, %s228
    $region4: #{tpu_custom_call.1} parent=1 // loop_header_branch
      %23 = sbr.rel (%p21) target = $region8
    $region5: #{tpu_custom_call.1} parent=1 // loop_body
      %s25 = ssub.s32 %s20, 1
      %s26 = ssub.s32 %s20, 2
      %s27 = sadd.s32 %s20, 1
      %s28 = ssub.s32 %s20, %s27
      %p29 = scmp.eq.s32.totalorder %s28, 0
      %s31 = sadd.s32 %s30, 1
      %s32 = scalar_select %p29, %s30, %s31
      %p35 = pneg %p29
      %p36 = scmp.eq.s32.totalorder %s20, 1
      %p37 = por %p35, %p36
      %p38 = scmp.ne.s32.totalorder %s30, %s33
      %p39 = scmp.eq.s32.totalorder %s20, 0
      %p40 = por %p38, %p39
      %p41 = scmp.ne.s32.totalorder %s30, %s33
      %p42 = scmp.eq.s32.totalorder %s25, 1
      %p43 = por %p41, %p42
      %p44 = scmp.ne.s32.totalorder %s33, %s34
      %p45 = scmp.eq.s32.totalorder %s25, 0
      %p46 = por %p44, %p45
      %p47 = scmp.ne.s32.totalorder %s33, %s34
      %p48 = scmp.eq.s32.totalorder %s26, 1
      %p49 = por %p47, %p48
      %p51 = scmp.ne.s32.totalorder %s34, %s50
      %p52 = scmp.eq.s32.totalorder %s26, 0
      %p53 = por %p51, %p52
      %s55 = sadd.s32 %s54, 1
      %p58 = scmp.eq.s32.totalorder %s20, 1
      %p59 = scmp.ne.s32.totalorder %s54, %s56
      %p60 = scmp.eq.s32.totalorder %s20, 0
      %p61 = por %p59, %p60
      %p62 = scmp.ne.s32.totalorder %s54, %s56
      %p63 = scmp.eq.s32.totalorder %s25, 1
      %p64 = por %p62, %p63
      %p65 = scmp.ne.s32.totalorder %s56, %s57
      %p66 = scmp.eq.s32.totalorder %s25, 0
      %p67 = por %p65, %p66
      %p68 = scmp.ne.s32.totalorder %s56, %s57
      %p69 = scmp.eq.s32.totalorder %s26, 1
      %p70 = por %p68, %p69
      %p72 = scmp.ne.s32.totalorder %s57, %s71
      %p73 = scmp.eq.s32.totalorder %s26, 0
      %p74 = por %p72, %p73
      %s76 = sadd.s32 %s75, 1
      %p79 = scmp.eq.s32.totalorder %s20, 1
      %p80 = scmp.ne.s32.totalorder %s75, %s77
      %p81 = scmp.eq.s32.totalorder %s20, 0
      %p82 = por %p80, %p81
      %p83 = scmp.ne.s32.totalorder %s75, %s77
      %p84 = scmp.eq.s32.totalorder %s25, 1
      %p85 = por %p83, %p84
      %p86 = scmp.ne.s32.totalorder %s77, %s78
      %p87 = scmp.eq.s32.totalorder %s25, 0
      %p88 = por %p86, %p87
      %p89 = scmp.ne.s32.totalorder %s77, %s78
      %p90 = scmp.eq.s32.totalorder %s26, 1
      %p91 = por %p89, %p90
      %p93 = scmp.ne.s32.totalorder %s78, %s92
      %p94 = scmp.eq.s32.totalorder %s26, 0
      %p95 = por %p93, %p94
      %s97 = sadd.s32 %s96, 1
      %p100 = scmp.eq.s32.totalorder %s20, 1
      %p101 = scmp.ne.s32.totalorder %s96, %s98
      %p102 = scmp.eq.s32.totalorder %s20, 0
      %p103 = por %p101, %p102
      %p104 = scmp.ne.s32.totalorder %s96, %s98
      %p105 = scmp.eq.s32.totalorder %s25, 1
      %p106 = por %p104, %p105
      %p107 = scmp.ne.s32.totalorder %s98, %s99
      %p108 = scmp.eq.s32.totalorder %s25, 0
      %p109 = por %p107, %p108
      %p110 = scmp.ne.s32.totalorder %s98, %s99
      %p111 = scmp.eq.s32.totalorder %s26, 1
      %p112 = por %p110, %p111
      %p114 = scmp.ne.s32.totalorder %s99, %s113
      %p115 = scmp.eq.s32.totalorder %s26, 0
      %p116 = por %p114, %p115
      %s118 = sadd.s32 %s117, 1
      %p121 = scmp.eq.s32.totalorder %s20, 1
      %p122 = scmp.ne.s32.totalorder %s117, %s119
      %p123 = scmp.eq.s32.totalorder %s20, 0
      %p124 = por %p122, %p123
      %p125 = scmp.ne.s32.totalorder %s117, %s119
      %p126 = scmp.eq.s32.totalorder %s25, 1
      %p127 = por %p125, %p126
      %p128 = scmp.ne.s32.totalorder %s119, %s120
      %p129 = scmp.eq.s32.totalorder %s25, 0
      %p130 = por %p128, %p129
      %p131 = scmp.ne.s32.totalorder %s119, %s120
      %p132 = scmp.eq.s32.totalorder %s26, 1
      %p133 = por %p131, %p132
      %p135 = scmp.ne.s32.totalorder %s120, %s134
      %p136 = scmp.eq.s32.totalorder %s26, 0
      %p137 = por %p135, %p136
      %s139 = sadd.s32 %s138, 1
      %p142 = scmp.eq.s32.totalorder %s20, 1
      %p143 = scmp.ne.s32.totalorder %s138, %s140
      %p144 = scmp.eq.s32.totalorder %s20, 0
      %p145 = por %p143, %p144
      %p146 = scmp.ne.s32.totalorder %s138, %s140
      %p147 = scmp.eq.s32.totalorder %s25, 1
      %p148 = por %p146, %p147
      %p149 = scmp.ne.s32.totalorder %s140, %s141
      %p150 = scmp.eq.s32.totalorder %s25, 0
      %p151 = por %p149, %p150
      %p152 = scmp.ne.s32.totalorder %s140, %s141
      %p153 = scmp.eq.s32.totalorder %s26, 1
      %p154 = por %p152, %p153
      %p156 = scmp.ne.s32.totalorder %s141, %s155
      %p157 = scmp.eq.s32.totalorder %s26, 0
      %p158 = por %p156, %p157
      %s160 = sadd.s32 %s159, 1
      %p163 = scmp.eq.s32.totalorder %s20, 1
      %p164 = scmp.ne.s32.totalorder %s159, %s161
      %p165 = scmp.eq.s32.totalorder %s20, 0
      %p166 = por %p164, %p165
      %p167 = scmp.ne.s32.totalorder %s159, %s161
      %p168 = scmp.eq.s32.totalorder %s25, 1
      %p169 = por %p167, %p168
      %p170 = scmp.ne.s32.totalorder %s161, %s162
      %p171 = scmp.eq.s32.totalorder %s25, 0
      %p172 = por %p170, %p171
      %p173 = scmp.ne.s32.totalorder %s161, %s162
      %p174 = scmp.eq.s32.totalorder %s26, 1
      %p175 = por %p173, %p174
      %p177 = scmp.ne.s32.totalorder %s162, %s176
      %p178 = scmp.eq.s32.totalorder %s26, 0
      %p179 = por %p177, %p178
      %s181 = sadd.s32 %s180, 1
      %p184 = scmp.eq.s32.totalorder %s20, 1
      %p185 = scmp.ne.s32.totalorder %s180, %s182
      %p186 = scmp.eq.s32.totalorder %s20, 0
      %p187 = por %p185, %p186
      %p188 = scmp.ne.s32.totalorder %s180, %s182
      %p189 = scmp.eq.s32.totalorder %s25, 1
      %p190 = por %p188, %p189
      %p191 = scmp.ne.s32.totalorder %s182, %s183
      %p192 = scmp.eq.s32.totalorder %s25, 0
      %p193 = por %p191, %p192
      %p194 = scmp.ne.s32.totalorder %s182, %s183
      %p195 = scmp.eq.s32.totalorder %s26, 1
      %p196 = por %p194, %p195
      %p198 = scmp.ne.s32.totalorder %s183, %s197
      %p199 = scmp.eq.s32.totalorder %s26, 0
      %p200 = por %p198, %p199
      %s202 = sadd.s32 %s201, 1
      %p205 = scmp.eq.s32.totalorder %s20, 1
      %p206 = scmp.ne.s32.totalorder %s201, %s203
      %p207 = scmp.eq.s32.totalorder %s20, 0
      %p208 = por %p206, %p207
      %p209 = scmp.ne.s32.totalorder %s201, %s203
      %p210 = scmp.eq.s32.totalorder %s25, 1
      %p211 = por %p209, %p210
      %p212 = scmp.ne.s32.totalorder %s203, %s204
      %p213 = scmp.eq.s32.totalorder %s25, 0
      %p214 = por %p212, %p213
      %p215 = scmp.ne.s32.totalorder %s203, %s204
      %p216 = scmp.eq.s32.totalorder %s26, 1
      %p217 = por %p215, %p216
      %p219 = scmp.ne.s32.totalorder %s204, %s218
      %p220 = scmp.eq.s32.totalorder %s26, 0
      %p221 = por %p219, %p220
      %s222 = ssub.s32 %s20, %s27
      %p223 = scmp.eq.s32.totalorder %s222, 0
      %s225 = sadd.s32 %s224, 1
      %s226 = scalar_select %p223, %s224, %s225
      %p229 = pneg %p223
      %p230 = scmp.eq.s32.totalorder %s20, 1
      %p231 = por %p229, %p230
      %p232 = scmp.ne.s32.totalorder %s224, %s227
      %p233 = scmp.eq.s32.totalorder %s20, 0
      %p234 = por %p232, %p233
      %p235 = scmp.ne.s32.totalorder %s224, %s227
      %p236 = scmp.eq.s32.totalorder %s25, 1
      %p237 = por %p235, %p236
      %p238 = scmp.ne.s32.totalorder %s227, %s228
      %p239 = scmp.eq.s32.totalorder %s25, 0
      %p240 = por %p238, %p239
      %p241 = scmp.ne.s32.totalorder %s227, %s228
      %p242 = scmp.eq.s32.totalorder %s26, 1
      %p243 = por %p241, %p242
      %p245 = scmp.ne.s32.totalorder %s228, %s244
      %p246 = scmp.eq.s32.totalorder %s26, 0
      %p247 = por %p245, %p246
      %p248 = scmp.le.s32.totalorder 1, %s20
      %p249 = scmp.lt.s32.totalorder %s20, 3
      %p250 = pnand %p248, %p249
      %p251 = pneg %p250
      // Predicated region
      $region9: #{tpu_custom_call.1} parent=5 // pred_check
        _
      $region10: #{tpu_custom_call.1} parent=5 // pred_check_branch
        %253 = sbr.rel (%p250) target = $region12
      $region11: #{tpu_custom_call.1} parent=5 // pred_region
        %s254 = ssub.s32 %s20, 1
        // Predicated region
        $region13: #{tpu_custom_call.1} parent=11 // pred_check
          %p255 = pneg %p67
        $region14: #{tpu_custom_call.1} parent=11 // pred_check_branch
          %257 = sbr.rel (%p255) target = $region16
        $region15: #{tpu_custom_call.1} parent=11 // pred_region
          _
        $region16: #{tpu_custom_call.1} parent=11 // pred_fallthru
          _
        // Predicated region
        $region17: #{tpu_custom_call.1} parent=11 // pred_check
          %p258 = pneg %p88
        $region18: #{tpu_custom_call.1} parent=11 // pred_check_branch
          %260 = sbr.rel (%p258) target = $region20
        $region19: #{tpu_custom_call.1} parent=11 // pred_region
          _
        $region20: #{tpu_custom_call.1} parent=11 // pred_fallthru
          _
        // Predicated region
        $region21: #{tpu_custom_call.1} parent=11 // pred_check
          %p261 = pneg %p109
        $region22: #{tpu_custom_call.1} parent=11 // pred_check_branch
          %263 = sbr.rel (%p261) target = $region24
        $region23: #{tpu_custom_call.1} parent=11 // pred_region
          _
        $region24: #{tpu_custom_call.1} parent=11 // pred_fallthru
          _
        // Predicated region
        $region25: #{tpu_custom_call.1} parent=11 // pred_check
          %p264 = pneg %p130
        $region26: #{tpu_custom_call.1} parent=11 // pred_check_branch
          %266 = sbr.rel (%p264) target = $region28
        $region27: #{tpu_custom_call.1} parent=11 // pred_region
          _
        $region28: #{tpu_custom_call.1} parent=11 // pred_fallthru
          _
        // Predicated region
        $region29: #{tpu_custom_call.1} parent=11 // pred_check
          %p267 = pneg %p151
        $region30: #{tpu_custom_call.1} parent=11 // pred_check_branch
          %269 = sbr.rel (%p267) target = $region32
        $region31: #{tpu_custom_call.1} parent=11 // pred_region
          %s271 = ssub.s32 4096, 4096
          %272 = vsyncadd [#allocation3], %s271
          %s273 = sshll.u32 [#allocation2], 4
          %s274 = int_to_ptr.vmem [resolvable:$true] %s273
          %279 = dma.hbm_to_vmem [thread:$0]  %s5, 4096, %s274, [#allocation3], 128, 128, 8
        $region32: #{tpu_custom_call.1} parent=11 // pred_fallthru
          _
        // Predicated region
        $region33: #{tpu_custom_call.1} parent=11 // pred_check
          %p280 = pneg %p172
        $region34: #{tpu_custom_call.1} parent=11 // pred_check_branch
          %282 = sbr.rel (%p280) target = $region36
        $region35: #{tpu_custom_call.1} parent=11 // pred_region
          _
        $region36: #{tpu_custom_call.1} parent=11 // pred_fallthru
          _
        // Predicated region
        $region37: #{tpu_custom_call.1} parent=11 // pred_check
          %p283 = pneg %p193
        $region38: #{tpu_custom_call.1} parent=11 // pred_check_branch
          %285 = sbr.rel (%p283) target = $region40
        $region39: #{tpu_custom_call.1} parent=11 // pred_region
          %s287 = ssub.s32 2048, 2048
          %288 = vsyncadd [#allocation6], %s287
          %s289 = sshll.u32 [#allocation5], 4
          %s290 = int_to_ptr.vmem [resolvable:$true] %s289
          %295 = dma.hbm_to_vmem [thread:$0]  %s7, 2048, %s290, [#allocation6], 64, 64, 4
        $region40: #{tpu_custom_call.1} parent=11 // pred_fallthru
          _
        // Predicated region
        $region41: #{tpu_custom_call.1} parent=11 // pred_check
          %p296 = pneg %p214
        $region42: #{tpu_custom_call.1} parent=11 // pred_check_branch
          %298 = sbr.rel (%p296) target = $region44
        $region43: #{tpu_custom_call.1} parent=11 // pred_region
          _
        $region44: #{tpu_custom_call.1} parent=11 // pred_fallthru
          _
      $region12: #{tpu_custom_call.1} parent=5 // pred_fallthru
        _
      %p299 = scmp.lt.s32.totalorder %s20, 2
      // Predicated region
      $region45: #{tpu_custom_call.1} parent=5 // pred_check
        %p300 = pneg %p299
      $region46: #{tpu_custom_call.1} parent=5 // pred_check_branch
        %302 = sbr.rel (%p300) target = $region48
      $region47: #{tpu_custom_call.1} parent=5 // pred_region
        // Predicated region
        $region49: #{tpu_custom_call.1} parent=47 // pred_check
          %p303 = pneg %p40
        $region50: #{tpu_custom_call.1} parent=47 // pred_check_branch
          %305 = sbr.rel (%p303) target = $region52
        $region51: #{tpu_custom_call.1} parent=47 // pred_region
          %s306 = smul.u32 32, %s20
          %p307 = scmp.lt.s32.totalorder %s306, 63
          %s308 = scalar_select %p307, %s306, 63
          %s309 = smul.addr %s308, 4
          %s310 = scalar_lea.vmem %s0, %s309
          %s311 = smul.u32 32, %s20
        $region52: #{tpu_custom_call.1} parent=47 // pred_fallthru
          _
      $region48: #{tpu_custom_call.1} parent=5 // pred_fallthru
        _
      %p312 = scmp.le.s32.totalorder 1, %s20
      %p313 = scmp.lt.s32.totalorder %s20, 3
      %p314 = pnand %p312, %p313
      %p315 = pneg %p314
      // Predicated region
      $region53: #{tpu_custom_call.1} parent=5 // pred_check
        _
      $region54: #{tpu_custom_call.1} parent=5 // pred_check_branch
        %317 = sbr.rel (%p314) target = $region56
      $region55: #{tpu_custom_call.1} parent=5 // pred_region
        %s318 = ssub.s32 %s20, 1
        // Predicated region
        $region57: #{tpu_custom_call.1} parent=55 // pred_check
          %p319 = pneg %p151
        $region58: #{tpu_custom_call.1} parent=55 // pred_check_branch
          %321 = sbr.rel (%p319) target = $region60
        $region59: #{tpu_custom_call.1} parent=55 // pred_region
          %322 = dma.done [#allocation3], 4096
        $region60: #{tpu_custom_call.1} parent=55 // pred_fallthru
          _
        // Predicated region
        $region61: #{tpu_custom_call.1} parent=55 // pred_check
          %p323 = pneg %p193
        $region62: #{tpu_custom_call.1} parent=55 // pred_check_branch
          %325 = sbr.rel (%p323) target = $region64
        $region63: #{tpu_custom_call.1} parent=55 // pred_region
          %326 = dma.done [#allocation6], 2048
        $region64: #{tpu_custom_call.1} parent=55 // pred_fallthru
          _
        %s327 = smul.u32 32, %s25
        %p328 = scmp.lt.s32.totalorder %s327, 63
        %s329 = scalar_select %p328, %s327, 63
        %s330 = smul.addr %s329, 4
        %s331 = scalar_lea.vmem %s0, %s330
        %p332 = pneg %p46
        %p333 = pneg %p43
        %p334 = pneg %p67
        %p335 = pneg %p64
        %p336 = pneg %p88
        %p337 = pneg %p85
        %p338 = pneg %p109
        %p339 = pneg %p106
        %p340 = pneg %p130
        %p341 = pneg %p127
        %p342 = pneg %p151
        %p343 = pneg %p148
        %p344 = pneg %p172
        %p345 = pneg %p169
        %p346 = pneg %p193
        %p347 = pneg %p190
        %p348 = pneg %p214
        %p349 = pneg %p211
        %p350 = pneg %p240
        %p351 = pneg %p237
        %s352 = sand.u32 %s227, 1
        %s353 = scalar_lea.sflag [#allocation4], %s352
        %s354 = sand.u32 %s227, 1
        %s355 = smul.addr %s354, 256
        %s356 = scalar_lea.vmem [#allocation7], %s355
        %s357 = smul.u32 32, %s25
        %p358 = scmp.lt.s32.totalorder %s357, 63
        %s359 = scalar_select %p358, %s357, 63
        %s360 = smul.addr %s359, 4
        %s361 = scalar_lea.vmem %s0, %s360
        %s362 = smul.u32 32, %s25
        %s363 = smul.u32 32, %s25
        %v365 = vld [vmem:[%s361] sm:$0xf]
        %v366 = vld [vmem:[%s361 + $0x4] sm:$0xf]
        %v367 = vld [vmem:[%s361 + $0x8] sm:$0xf]
        %v368 = vld [vmem:[%s361 + $0xc] sm:$0xf]
        %v369 = vld [vmem:[%s361 + $0x10] sm:$0xf]
        %v370 = vld [vmem:[%s361 + $0x14] sm:$0xf]
        %v371 = vld [vmem:[%s361 + $0x18] sm:$0xf]
        %v372 = vld [vmem:[%s361 + $0x1c] sm:$0xf]
        %v373 = vld [vmem:[%s361 + $0x20] sm:$0xf]
        %v374 = vld [vmem:[%s361 + $0x24] sm:$0xf]
        %v375 = vld [vmem:[%s361 + $0x28] sm:$0xf]
        %v376 = vld [vmem:[%s361 + $0x2c] sm:$0xf]
        %v377 = vld [vmem:[%s361 + $0x30] sm:$0xf]
        %v378 = vld [vmem:[%s361 + $0x34] sm:$0xf]
        %v379 = vld [vmem:[%s361 + $0x38] sm:$0xf]
        %v380 = vld [vmem:[%s361 + $0x3c] sm:$0xf]
        %v381 = vld [vmem:[%s361 + $0x40] sm:$0xf]
        %v382 = vld [vmem:[%s361 + $0x44] sm:$0xf]
        %v383 = vld [vmem:[%s361 + $0x48] sm:$0xf]
        %v384 = vld [vmem:[%s361 + $0x4c] sm:$0xf]
        %v385 = vld [vmem:[%s361 + $0x50] sm:$0xf]
        %v386 = vld [vmem:[%s361 + $0x54] sm:$0xf]
        %v387 = vld [vmem:[%s361 + $0x58] sm:$0xf]
        %v388 = vld [vmem:[%s361 + $0x5c] sm:$0xf]
        %v389 = vld [vmem:[%s361 + $0x60] sm:$0xf]
        %v390 = vld [vmem:[%s361 + $0x64] sm:$0xf]
        %v391 = vld [vmem:[%s361 + $0x68] sm:$0xf]
        %v392 = vld [vmem:[%s361 + $0x6c] sm:$0xf]
        %v393 = vld [vmem:[%s361 + $0x70] sm:$0xf]
        %v394 = vld [vmem:[%s361 + $0x74] sm:$0xf]
        %v395 = vld [vmem:[%s361 + $0x78] sm:$0xf]
        %v396 = vld [vmem:[%s361 + $0x7c] sm:$0xf]
        %v397 = vld [vmem:[%s1] sm:$0xff]
        %v398 = vld [vmem:[%s1 + $0x8] sm:$0xff]
        %v399 = vld [vmem:[%s1 + $0x10] sm:$0xff]
        %v400 = vld [vmem:[%s1 + $0x18] sm:$0xff]
        %v401 = vld [vmem:[%s2] sm:$0x3]
        %v403 = vlaneseq
        %v404 = vshrl.u32 %v403, 7
        %v405 = vsub.s32 0, %v404
        %v406 = vrot.slane %v401, %v405
        %v407 = vlaneseq
        %v408 = vshrl.u32 %v407, 7
        %v409 = vsub.s32 1, %v408
        %v410 = vrot.slane %v401, %v409
        %v445 = vunpack.c.l.b16 %v365
        %v446 = vunpack.c.l.b16 %v366
        %v447 = vunpack.c.l.b16 %v367
        %v448 = vunpack.c.l.b16 %v368
        %v449 = vunpack.c.l.b16 %v369
        %v450 = vunpack.c.l.b16 %v370
        %v451 = vunpack.c.l.b16 %v371
        %v452 = vunpack.c.l.b16 %v372
        %v453 = vunpack.c.l.b16 %v373
        %v454 = vunpack.c.l.b16 %v374
        %v455 = vunpack.c.l.b16 %v375
        %v456 = vunpack.c.l.b16 %v376
        %v457 = vunpack.c.l.b16 %v377
        %v458 = vunpack.c.l.b16 %v378
        %v459 = vunpack.c.l.b16 %v379
        %v460 = vunpack.c.l.b16 %v380
        %v461 = vunpack.c.l.b16 %v381
        %v462 = vunpack.c.l.b16 %v382
        %v463 = vunpack.c.l.b16 %v383
        %v464 = vunpack.c.l.b16 %v384
        %v465 = vunpack.c.l.b16 %v385
        %v466 = vunpack.c.l.b16 %v386
        %v467 = vunpack.c.l.b16 %v387
        %v468 = vunpack.c.l.b16 %v388
        %v469 = vunpack.c.l.b16 %v389
        %v470 = vunpack.c.l.b16 %v390
        %v471 = vunpack.c.l.b16 %v391
        %v472 = vunpack.c.l.b16 %v392
        %v473 = vunpack.c.l.b16 %v393
        %v474 = vunpack.c.l.b16 %v394
        %v475 = vunpack.c.l.b16 %v395
        %v476 = vunpack.c.l.b16 %v396
        %v477 = vpack.c.b16 %v446, %v445
        %v478 = vpack.c.b16 %v448, %v447
        %v479 = vpack.c.b16 %v450, %v449
        %v480 = vpack.c.b16 %v452, %v451
        %v481 = vpack.c.b16 %v454, %v453
        %v482 = vpack.c.b16 %v456, %v455
        %v483 = vpack.c.b16 %v458, %v457
        %v484 = vpack.c.b16 %v460, %v459
        %v485 = vpack.c.b16 %v462, %v461
        %v486 = vpack.c.b16 %v464, %v463
        %v487 = vpack.c.b16 %v466, %v465
        %v488 = vpack.c.b16 %v468, %v467
        %v489 = vpack.c.b16 %v470, %v469
        %v490 = vpack.c.b16 %v472, %v471
        %v491 = vpack.c.b16 %v474, %v473
        %v492 = vpack.c.b16 %v476, %v475
        %v497 = vunpack.c.l.b16 %v397
        %v498 = vunpack.c.h.b16 %v397
        %v499 = vunpack.c.l.b16 %v398
        %v500 = vunpack.c.h.b16 %v398
        %v501 = vunpack.c.l.b16 %v399
        %v502 = vunpack.c.h.b16 %v399
        %v503 = vunpack.c.l.b16 %v400
        %v504 = vunpack.c.h.b16 %v400
        %v505 = vpack.c.b16 %v499, %v497
        %v506 = vpack.c.b16 %v500, %v498
        %v507 = vpack.c.b16 %v503, %v501
        %v508 = vpack.c.b16 %v504, %v502
        %vm513 = vcmask 261120
        %v515 = vsel %vm513, %v477, 0
        %v518 = vsel %vm513, %v478, 0
        %v521 = vsel %vm513, %v479, 0
        %v524 = vsel %vm513, %v480, 0
        %v527 = vsel %vm513, %v481, 0
        %v530 = vsel %vm513, %v482, 0
        %v533 = vsel %vm513, %v483, 0
        %v536 = vsel %vm513, %v484, 0
        %v539 = vsel %vm513, %v485, 0
        %v542 = vsel %vm513, %v486, 0
        %v545 = vsel %vm513, %v487, 0
        %v548 = vsel %vm513, %v488, 0
        %v551 = vsel %vm513, %v489, 0
        %v554 = vsel %vm513, %v490, 0
        %v557 = vsel %vm513, %v491, 0
        %v560 = vsel %vm513, %v492, 0
        %562 = vmatprep.subr.bf16.mxu0 %v506
        %563 = vmatpush1.bf16.msra.mxu0 %v505
        %564 = vmatprep.subr.bf16.mxu0 %v508
        %565 = vmatpush1.bf16.msra.mxu0 %v507
        %566 = vmatprep.subr.bf16.mxu0 0
        %567 = vmatpush1.bf16.msra.mxu0 0
        %568 = vmatprep.subr.bf16.mxu0 0
        %569 = vmatpush1.bf16.msra.mxu0 0
        %570 = vmatprep.subr.bf16.mxu0 0
        %571 = vmatpush1.bf16.msra.mxu0 0
        %572 = vmatprep.subr.bf16.mxu0 0
        %573 = vmatpush1.bf16.msra.mxu0 0
        %574 = vmatprep.subr.bf16.mxu0 0
        %575 = vmatpush1.bf16.msra.mxu0 0
        %576 = vmatprep.subr.bf16.mxu0 0
        %577 = vmatpush1.bf16.msra.mxu0 0
        %578 = vmatprep.subr.bf16.mxu0 0
        %579 = vmatpush1.bf16.msra.mxu0 0
        %580 = vmatprep.subr.bf16.mxu0 0
        %581 = vmatpush1.bf16.msra.mxu0 0
        %582 = vmatprep.subr.bf16.mxu0 0
        %583 = vmatpush1.bf16.msra.mxu0 0
        %584 = vmatprep.subr.bf16.mxu0 0
        %585 = vmatpush1.bf16.msra.mxu0 0
        %586 = vmatprep.subr.bf16.mxu0 0
        %587 = vmatpush1.bf16.msra.mxu0 0
        %588 = vmatprep.subr.bf16.mxu0 0
        %589 = vmatpush1.bf16.msra.mxu0 0
        %590 = vmatprep.subr.bf16.mxu0 0
        %591 = vmatpush1.bf16.msra.mxu0 0
        %592 = vmatprep.subr.bf16.mxu0 0
        %593 = vmatpush1.bf16.msra.mxu0 0
        %594 = vmatprep.mubr.bf16.mxu0 0
        %595 = vmatmul.mubr.bf16.gmra.mrb[0].mxu0 %v515
        %v596 = vpop.f32.mrb[0].mxu0
        %v597 = vadd.f32 %v406, %v596
        %v598 = vpop.f32.mrb[0].mxu0
        %v599 = vadd.f32 %v410, %v598
        %v600 = vpop.f32.mrb[0].mxu0
        %v601 = vadd.f32 %v406, %v600
        %v602 = vpop.f32.mrb[0].mxu0
        %v603 = vadd.f32 %v410, %v602
        %604 = vmatprep.mubr.bf16.mxu0 0
        %605 = vmatmul.mubr.bf16.gmra.mrb[0].mxu0 %v518
        %v606 = vpop.f32.mrb[0].mxu0
        %v607 = vadd.f32 %v406, %v606
        %v608 = vpop.f32.mrb[0].mxu0
        %v609 = vadd.f32 %v410, %v608
        %v610 = vpop.f32.mrb[0].mxu0
        %v611 = vadd.f32 %v406, %v610
        %v612 = vpop.f32.mrb[0].mxu0
        %v613 = vadd.f32 %v410, %v612
        %614 = vmatprep.mubr.bf16.mxu0 0
        %615 = vmatmul.mubr.bf16.gmra.mrb[0].mxu0 %v521
        %v616 = vpop.f32.mrb[0].mxu0
        %v617 = vadd.f32 %v406, %v616
        %v618 = vpop.f32.mrb[0].mxu0
        %v619 = vadd.f32 %v410, %v618
        %v620 = vpop.f32.mrb[0].mxu0
        %v621 = vadd.f32 %v406, %v620
        %v622 = vpop.f32.mrb[0].mxu0
        %v623 = vadd.f32 %v410, %v622
        %624 = vmatprep.mubr.bf16.mxu0 0
        %625 = vmatmul.mubr.bf16.gmra.mrb[0].mxu0 %v524
        %v626 = vpop.f32.mrb[0].mxu0
        %v627 = vadd.f32 %v406, %v626
        %v628 = vpop.f32.mrb[0].mxu0
        %v629 = vadd.f32 %v410, %v628
        %v630 = vpop.f32.mrb[0].mxu0
        %v631 = vadd.f32 %v406, %v630
        %v632 = vpop.f32.mrb[0].mxu0
        %v633 = vadd.f32 %v410, %v632
        %634 = vmatprep.mubr.bf16.mxu0 0
        %635 = vmatmul.mubr.bf16.gmra.mrb[0].mxu0 %v527
        %v636 = vpop.f32.mrb[0].mxu0
        %v637 = vadd.f32 %v406, %v636
        %v638 = vpop.f32.mrb[0].mxu0
        %v639 = vadd.f32 %v410, %v638
        %v640 = vpop.f32.mrb[0].mxu0
        %v641 = vadd.f32 %v406, %v640
        %v642 = vpop.f32.mrb[0].mxu0
        %v643 = vadd.f32 %v410, %v642
        %644 = vmatprep.mubr.bf16.mxu0 0
        %645 = vmatmul.mubr.bf16.gmra.mrb[0].mxu0 %v530
        %v646 = vpop.f32.mrb[0].mxu0
        %v647 = vadd.f32 %v406, %v646
        %v648 = vpop.f32.mrb[0].mxu0
        %v649 = vadd.f32 %v410, %v648
        %v650 = vpop.f32.mrb[0].mxu0
        %v651 = vadd.f32 %v406, %v650
        %v652 = vpop.f32.mrb[0].mxu0
        %v653 = vadd.f32 %v410, %v652
        %654 = vmatprep.mubr.bf16.mxu0 0
        %655 = vmatmul.mubr.bf16.gmra.mrb[0].mxu0 %v533
        %v656 = vpop.f32.mrb[0].mxu0
        %v657 = vadd.f32 %v406, %v656
        %v658 = vpop.f32.mrb[0].mxu0
        %v659 = vadd.f32 %v410, %v658
        %v660 = vpop.f32.mrb[0].mxu0
        %v661 = vadd.f32 %v406, %v660
        %v662 = vpop.f32.mrb[0].mxu0
        %v663 = vadd.f32 %v410, %v662
        %664 = vmatprep.mubr.bf16.mxu0 0
        %665 = vmatmul.mubr.bf16.gmra.mrb[0].mxu0 %v536
        %v666 = vpop.f32.mrb[0].mxu0
        %v667 = vadd.f32 %v406, %v666
        %v668 = vpop.f32.mrb[0].mxu0
        %v669 = vadd.f32 %v410, %v668
        %v670 = vpop.f32.mrb[0].mxu0
        %v671 = vadd.f32 %v406, %v670
        %v672 = vpop.f32.mrb[0].mxu0
        %v673 = vadd.f32 %v410, %v672
        %674 = vmatprep.mubr.bf16.mxu0 0
        %675 = vmatmul.mubr.bf16.gmra.mrb[0].mxu0 %v539
        %v676 = vpop.f32.mrb[0].mxu0
        %v677 = vadd.f32 %v406, %v676
        %v678 = vpop.f32.mrb[0].mxu0
        %v679 = vadd.f32 %v410, %v678
        %v680 = vpop.f32.mrb[0].mxu0
        %v681 = vadd.f32 %v406, %v680
        %v682 = vpop.f32.mrb[0].mxu0
        %v683 = vadd.f32 %v410, %v682
        %684 = vmatprep.mubr.bf16.mxu0 0
        %685 = vmatmul.mubr.bf16.gmra.mrb[0].mxu0 %v542
        %v686 = vpop.f32.mrb[0].mxu0
        %v687 = vadd.f32 %v406, %v686
        %v688 = vpop.f32.mrb[0].mxu0
        %v689 = vadd.f32 %v410, %v688
        %v690 = vpop.f32.mrb[0].mxu0
        %v691 = vadd.f32 %v406, %v690
        %v692 = vpop.f32.mrb[0].mxu0
        %v693 = vadd.f32 %v410, %v692
        %694 = vmatprep.mubr.bf16.mxu0 0
        %695 = vmatmul.mubr.bf16.gmra.mrb[0].mxu0 %v545
        %v696 = vpop.f32.mrb[0].mxu0
        %v697 = vadd.f32 %v406, %v696
        %v698 = vpop.f32.mrb[0].mxu0
        %v699 = vadd.f32 %v410, %v698
        %v700 = vpop.f32.mrb[0].mxu0
        %v701 = vadd.f32 %v406, %v700
        %v702 = vpop.f32.mrb[0].mxu0
        %v703 = vadd.f32 %v410, %v702
        %704 = vmatprep.mubr.bf16.mxu0 0
        %705 = vmatmul.mubr.bf16.gmra.mrb[0].mxu0 %v548
        %v706 = vpop.f32.mrb[0].mxu0
        %v707 = vadd.f32 %v406, %v706
        %v708 = vpop.f32.mrb[0].mxu0
        %v709 = vadd.f32 %v410, %v708
        %v710 = vpop.f32.mrb[0].mxu0
        %v711 = vadd.f32 %v406, %v710
        %v712 = vpop.f32.mrb[0].mxu0
        %v713 = vadd.f32 %v410, %v712
        %714 = vmatprep.mubr.bf16.mxu0 0
        %715 = vmatmul.mubr.bf16.gmra.mrb[0].mxu0 %v551
        %v716 = vpop.f32.mrb[0].mxu0
        %v717 = vadd.f32 %v406, %v716
        %v718 = vpop.f32.mrb[0].mxu0
        %v719 = vadd.f32 %v410, %v718
        %v720 = vpop.f32.mrb[0].mxu0
        %v721 = vadd.f32 %v406, %v720
        %v722 = vpop.f32.mrb[0].mxu0
        %v723 = vadd.f32 %v410, %v722
        %724 = vmatprep.mubr.bf16.mxu0 0
        %725 = vmatmul.mubr.bf16.gmra.mrb[0].mxu0 %v554
        %v726 = vpop.f32.mrb[0].mxu0
        %v727 = vadd.f32 %v406, %v726
        %v728 = vpop.f32.mrb[0].mxu0
        %v729 = vadd.f32 %v410, %v728
        %v730 = vpop.f32.mrb[0].mxu0
        %v731 = vadd.f32 %v406, %v730
        %v732 = vpop.f32.mrb[0].mxu0
        %v733 = vadd.f32 %v410, %v732
        %734 = vmatprep.mubr.bf16.mxu0 0
        %735 = vmatmul.mubr.bf16.gmra.mrb[0].mxu0 %v557
        %v736 = vpop.f32.mrb[0].mxu0
        %v737 = vadd.f32 %v406, %v736
        %v738 = vpop.f32.mrb[0].mxu0
        %v739 = vadd.f32 %v410, %v738
        %v740 = vpop.f32.mrb[0].mxu0
        %v741 = vadd.f32 %v406, %v740
        %v742 = vpop.f32.mrb[0].mxu0
        %v743 = vadd.f32 %v410, %v742
        %744 = vmatprep.mubr.bf16.mxu0 0
        %745 = vmatmul.mubr.bf16.gmra.mrb[0].mxu0 %v560
        %v746 = vpop.f32.mrb[0].mxu0
        %v747 = vadd.f32 %v406, %v746
        %v748 = vpop.f32.mrb[0].mxu0
        %v749 = vadd.f32 %v410, %v748
        %v750 = vpop.f32.mrb[0].mxu0
        %v751 = vadd.f32 %v406, %v750
        %v752 = vpop.f32.mrb[0].mxu0
        %v753 = vadd.f32 %v410, %v752
        %754 = vdwg.mxu0
        %v755 = vmax.f32 %v597, 0.0
        %v756 = vmax.f32 %v599, 0.0
        %v757 = vmax.f32 %v601, 0.0
        %v758 = vmax.f32 %v603, 0.0
        %v759 = vmax.f32 %v607, 0.0
        %v760 = vmax.f32 %v609, 0.0
        %v761 = vmax.f32 %v611, 0.0
        %v762 = vmax.f32 %v613, 0.0
        %v763 = vmax.f32 %v617, 0.0
        %v764 = vmax.f32 %v619, 0.0
        %v765 = vmax.f32 %v621, 0.0
        %v766 = vmax.f32 %v623, 0.0
        %v767 = vmax.f32 %v627, 0.0
        %v768 = vmax.f32 %v629, 0.0
        %v769 = vmax.f32 %v631, 0.0
        %v770 = vmax.f32 %v633, 0.0
        %v771 = vmax.f32 %v637, 0.0
        %v772 = vmax.f32 %v639, 0.0
        %v773 = vmax.f32 %v641, 0.0
        %v774 = vmax.f32 %v643, 0.0
        %v775 = vmax.f32 %v647, 0.0
        %v776 = vmax.f32 %v649, 0.0
        %v777 = vmax.f32 %v651, 0.0
        %v778 = vmax.f32 %v653, 0.0
        %v779 = vmax.f32 %v657, 0.0
        %v780 = vmax.f32 %v659, 0.0
        %v781 = vmax.f32 %v661, 0.0
        %v782 = vmax.f32 %v663, 0.0
        %v783 = vmax.f32 %v667, 0.0
        %v784 = vmax.f32 %v669, 0.0
        %v785 = vmax.f32 %v671, 0.0
        %v786 = vmax.f32 %v673, 0.0
        %v787 = vmax.f32 %v677, 0.0
        %v788 = vmax.f32 %v679, 0.0
        %v789 = vmax.f32 %v681, 0.0
        %v790 = vmax.f32 %v683, 0.0
        %v791 = vmax.f32 %v687, 0.0
        %v792 = vmax.f32 %v689, 0.0
        %v793 = vmax.f32 %v691, 0.0
        %v794 = vmax.f32 %v693, 0.0
        %v795 = vmax.f32 %v697, 0.0
        %v796 = vmax.f32 %v699, 0.0
        %v797 = vmax.f32 %v701, 0.0
        %v798 = vmax.f32 %v703, 0.0
        %v799 = vmax.f32 %v707, 0.0
        %v800 = vmax.f32 %v709, 0.0
        %v801 = vmax.f32 %v711, 0.0
        %v802 = vmax.f32 %v713, 0.0
        %v803 = vmax.f32 %v717, 0.0
        %v804 = vmax.f32 %v719, 0.0
        %v805 = vmax.f32 %v721, 0.0
        %v806 = vmax.f32 %v723, 0.0
        %v807 = vmax.f32 %v727, 0.0
        %v808 = vmax.f32 %v729, 0.0
        %v809 = vmax.f32 %v731, 0.0
        %v810 = vmax.f32 %v733, 0.0
        %v811 = vmax.f32 %v737, 0.0
        %v812 = vmax.f32 %v739, 0.0
        %v813 = vmax.f32 %v741, 0.0
        %v814 = vmax.f32 %v743, 0.0
        %v815 = vmax.f32 %v747, 0.0
        %v816 = vmax.f32 %v749, 0.0
        %v817 = vmax.f32 %v751, 0.0
        %v818 = vmax.f32 %v753, 0.0
        %v819 = vpack.c.bf16 %v757, %v755
        %v820 = vpack.c.bf16 %v758, %v756
        %v821 = vpack.c.bf16 %v761, %v759
        %v822 = vpack.c.bf16 %v762, %v760
        %v823 = vpack.c.bf16 %v765, %v763
        %v824 = vpack.c.bf16 %v766, %v764
        %v825 = vpack.c.bf16 %v769, %v767
        %v826 = vpack.c.bf16 %v770, %v768
        %v827 = vpack.c.bf16 %v773, %v771
        %v828 = vpack.c.bf16 %v774, %v772
        %v829 = vpack.c.bf16 %v777, %v775
        %v830 = vpack.c.bf16 %v778, %v776
        %v831 = vpack.c.bf16 %v781, %v779
        %v832 = vpack.c.bf16 %v782, %v780
        %v833 = vpack.c.bf16 %v785, %v783
        %v834 = vpack.c.bf16 %v786, %v784
        %v835 = vpack.c.bf16 %v789, %v787
        %v836 = vpack.c.bf16 %v790, %v788
        %v837 = vpack.c.bf16 %v793, %v791
        %v838 = vpack.c.bf16 %v794, %v792
        %v839 = vpack.c.bf16 %v797, %v795
        %v840 = vpack.c.bf16 %v798, %v796
        %v841 = vpack.c.bf16 %v801, %v799
        %v842 = vpack.c.bf16 %v802, %v800
        %v843 = vpack.c.bf16 %v805, %v803
        %v844 = vpack.c.bf16 %v806, %v804
        %v845 = vpack.c.bf16 %v809, %v807
        %v846 = vpack.c.bf16 %v810, %v808
        %v847 = vpack.c.bf16 %v813, %v811
        %v848 = vpack.c.bf16 %v814, %v812
        %v849 = vpack.c.bf16 %v817, %v815
        %v850 = vpack.c.bf16 %v818, %v816
        %v851 = vld [vmem:[%s3] sm:$0xff]
        %v852 = vld [vmem:[%s3 + $0x8] sm:$0xff]
        %v853 = vld [vmem:[%s3 + $0x10] sm:$0xff]
        %v854 = vld [vmem:[%s3 + $0x18] sm:$0xff]
        %v855 = vld [vmem:[%s3 + $0x20] sm:$0xff]
        %v856 = vld [vmem:[%s3 + $0x28] sm:$0xff]
        %v857 = vld [vmem:[%s3 + $0x30] sm:$0xff]
        %v858 = vld [vmem:[%s3 + $0x38] sm:$0xff]
        %v859 = vld [vmem:[%s3 + $0x40] sm:$0xff]
        %v860 = vld [vmem:[%s3 + $0x48] sm:$0xff]
        %v861 = vld [vmem:[%s3 + $0x50] sm:$0xff]
        %v862 = vld [vmem:[%s3 + $0x58] sm:$0xff]
        %v863 = vld [vmem:[%s3 + $0x60] sm:$0xff]
        %v864 = vld [vmem:[%s3 + $0x68] sm:$0xff]
        %v865 = vld [vmem:[%s3 + $0x70] sm:$0xff]
        %v866 = vld [vmem:[%s3 + $0x78] sm:$0xff]
        %v867 = vld [vmem:[%s3 + $0x80] sm:$0xff]
        %v868 = vld [vmem:[%s3 + $0x88] sm:$0xff]
        %v869 = vld [vmem:[%s3 + $0x90] sm:$0xff]
        %v870 = vld [vmem:[%s3 + $0x98] sm:$0xff]
        %v871 = vld [vmem:[%s3 + $0xa0] sm:$0xff]
        %v872 = vld [vmem:[%s3 + $0xa8] sm:$0xff]
        %v873 = vld [vmem:[%s3 + $0xb0] sm:$0xff]
        %v874 = vld [vmem:[%s3 + $0xb8] sm:$0xff]
        %v875 = vld [vmem:[%s3 + $0xc0] sm:$0xff]
        %v876 = vld [vmem:[%s3 + $0xc8] sm:$0xff]
        %v877 = vld [vmem:[%s3 + $0xd0] sm:$0xff]
        %v878 = vld [vmem:[%s3 + $0xd8] sm:$0xff]
        %v879 = vld [vmem:[%s3 + $0xe0] sm:$0xff]
        %v880 = vld [vmem:[%s3 + $0xe8] sm:$0xff]
        %v881 = vld [vmem:[%s3 + $0xf0] sm:$0xff]
        %v882 = vld [vmem:[%s3 + $0xf8] sm:$0xff]
        %v883 = vld [vmem:[%s4] sm:$0x3]
        %v885 = vlaneseq
        %v886 = vshrl.u32 %v885, 7
        %v887 = vsub.s32 0, %v886
        %v888 = vrot.slane %v883, %v887
        %v889 = vlaneseq
        %v890 = vshrl.u32 %v889, 7
        %v891 = vsub.s32 1, %v890
        %v892 = vrot.slane %v883, %v891
        %v927 = vunpack.c.l.b16 %v851
        %v928 = vunpack.c.h.b16 %v851
        %v929 = vunpack.c.l.b16 %v852
        %v930 = vunpack.c.h.b16 %v852
        %v931 = vunpack.c.l.b16 %v853
        %v932 = vunpack.c.h.b16 %v853
        %v933 = vunpack.c.l.b16 %v854
        %v934 = vunpack.c.h.b16 %v854
        %v935 = vunpack.c.l.b16 %v855
        %v936 = vunpack.c.h.b16 %v855
        %v937 = vunpack.c.l.b16 %v856
        %v938 = vunpack.c.h.b16 %v856
        %v939 = vunpack.c.l.b16 %v857
        %v940 = vunpack.c.h.b16 %v857
        %v941 = vunpack.c.l.b16 %v858
        %v942 = vunpack.c.h.b16 %v858
        %v943 = vunpack.c.l.b16 %v859
        %v944 = vunpack.c.h.b16 %v859
        %v945 = vunpack.c.l.b16 %v860
        %v946 = vunpack.c.h.b16 %v860
        %v947 = vunpack.c.l.b16 %v861
        %v948 = vunpack.c.h.b16 %v861
        %v949 = vunpack.c.l.b16 %v862
        %v950 = vunpack.c.h.b16 %v862
        %v951 = vunpack.c.l.b16 %v863
        %v952 = vunpack.c.h.b16 %v863
        %v953 = vunpack.c.l.b16 %v864
        %v954 = vunpack.c.h.b16 %v864
        %v955 = vunpack.c.l.b16 %v865
        %v956 = vunpack.c.h.b16 %v865
        %v957 = vunpack.c.l.b16 %v866
        %v958 = vunpack.c.h.b16 %v866
        %v959 = vunpack.c.l.b16 %v867
        %v960 = vunpack.c.h.b16 %v867
        %v961 = vunpack.c.l.b16 %v868
        %v962 = vunpack.c.h.b16 %v868
        %v963 = vunpack.c.l.b16 %v869
        %v964 = vunpack.c.h.b16 %v869
        %v965 = vunpack.c.l.b16 %v870
        %v966 = vunpack.c.h.b16 %v870
        %v967 = vunpack.c.l.b16 %v871
        %v968 = vunpack.c.h.b16 %v871
        %v969 = vunpack.c.l.b16 %v872
        %v970 = vunpack.c.h.b16 %v872
        %v971 = vunpack.c.l.b16 %v873
        %v972 = vunpack.c.h.b16 %v873
        %v973 = vunpack.c.l.b16 %v874
        %v974 = vunpack.c.h.b16 %v874
        %v975 = vunpack.c.l.b16 %v875
        %v976 = vunpack.c.h.b16 %v875
        %v977 = vunpack.c.l.b16 %v876
        %v978 = vunpack.c.h.b16 %v876
        %v979 = vunpack.c.l.b16 %v877
        %v980 = vunpack.c.h.b16 %v877
        %v981 = vunpack.c.l.b16 %v878
        %v982 = vunpack.c.h.b16 %v878
        %v983 = vunpack.c.l.b16 %v879
        %v984 = vunpack.c.h.b16 %v879
        %v985 = vunpack.c.l.b16 %v880
        %v986 = vunpack.c.h.b16 %v880
        %v987 = vunpack.c.l.b16 %v881
        %v988 = vunpack.c.h.b16 %v881
        %v989 = vunpack.c.l.b16 %v882
        %v990 = vunpack.c.h.b16 %v882
        %v991 = vpack.c.b16 %v929, %v927
        %v992 = vpack.c.b16 %v930, %v928
        %v993 = vpack.c.b16 %v933, %v931
        %v994 = vpack.c.b16 %v934, %v932
        %v995 = vpack.c.b16 %v937, %v935
        %v996 = vpack.c.b16 %v938, %v936
        %v997 = vpack.c.b16 %v941, %v939
        %v998 = vpack.c.b16 %v942, %v940
        %v999 = vpack.c.b16 %v945, %v943
        %v1000 = vpack.c.b16 %v946, %v944
        %v1001 = vpack.c.b16 %v949, %v947
        %v1002 = vpack.c.b16 %v950, %v948
        %v1003 = vpack.c.b16 %v953, %v951
        %v1004 = vpack.c.b16 %v954, %v952
        %v1005 = vpack.c.b16 %v957, %v955
        %v1006 = vpack.c.b16 %v958, %v956
        %v1007 = vpack.c.b16 %v961, %v959
        %v1008 = vpack.c.b16 %v962, %v960
        %v1009 = vpack.c.b16 %v965, %v963
        %v1010 = vpack.c.b16 %v966, %v964
        %v1011 = vpack.c.b16 %v969, %v967
        %v1012 = vpack.c.b16 %v970, %v968
        %v1013 = vpack.c.b16 %v973, %v971
        %v1014 = vpack.c.b16 %v974, %v972
        %v1015 = vpack.c.b16 %v977, %v975
        %v1016 = vpack.c.b16 %v978, %v976
        %v1017 = vpack.c.b16 %v981, %v979
        %v1018 = vpack.c.b16 %v982, %v980
        %v1019 = vpack.c.b16 %v985, %v983
        %v1020 = vpack.c.b16 %v986, %v984
        %v1021 = vpack.c.b16 %v989, %v987
        %v1022 = vpack.c.b16 %v990, %v988
        %1055 = vmatprep.subr.bf16.mxu0 %v992
        %1056 = vmatpush1.bf16.msra.mxu0 %v991
        %1057 = vmatprep.subr.bf16.mxu0 %v994
        %1058 = vmatpush1.bf16.msra.mxu0 %v993
        %1059 = vmatprep.subr.bf16.mxu0 %v996
        %1060 = vmatpush1.bf16.msra.mxu0 %v995
        %1061 = vmatprep.subr.bf16.mxu0 %v998
        %1062 = vmatpush1.bf16.msra.mxu0 %v997
        %1063 = vmatprep.subr.bf16.mxu0 %v1000
        %1064 = vmatpush1.bf16.msra.mxu0 %v999
        %1065 = vmatprep.subr.bf16.mxu0 %v1002
        %1066 = vmatpush1.bf16.msra.mxu0 %v1001
        %1067 = vmatprep.subr.bf16.mxu0 %v1004
        %1068 = vmatpush1.bf16.msra.mxu0 %v1003
        %1069 = vmatprep.subr.bf16.mxu0 %v1006
        %1070 = vmatpush1.bf16.msra.mxu0 %v1005
        %1071 = vmatprep.subr.bf16.mxu0 %v1008
        %1072 = vmatpush1.bf16.msra.mxu0 %v1007
        %1073 = vmatprep.subr.bf16.mxu0 %v1010
        %1074 = vmatpush1.bf16.msra.mxu0 %v1009
        %1075 = vmatprep.subr.bf16.mxu0 %v1012
        %1076 = vmatpush1.bf16.msra.mxu0 %v1011
        %1077 = vmatprep.subr.bf16.mxu0 %v1014
        %1078 = vmatpush1.bf16.msra.mxu0 %v1013
        %1079 = vmatprep.subr.bf16.mxu0 %v1016
        %1080 = vmatpush1.bf16.msra.mxu0 %v1015
        %1081 = vmatprep.subr.bf16.mxu0 %v1018
        %1082 = vmatpush1.bf16.msra.mxu0 %v1017
        %1083 = vmatprep.subr.bf16.mxu0 %v1020
        %1084 = vmatpush1.bf16.msra.mxu0 %v1019
        %1085 = vmatprep.subr.bf16.mxu0 %v1022
        %1086 = vmatpush1.bf16.msra.mxu0 %v1021
        %1087 = vmatprep.mubr.bf16.mxu0 %v820
        %1088 = vmatmul.mubr.bf16.gmra.mrb[0].mxu0 %v819
        %v1089 = vpop.f32.mrb[0].mxu0
        %v1090 = vadd.f32 %v888, %v1089
        %v1091 = vpop.f32.mrb[0].mxu0
        %v1092 = vadd.f32 %v892, %v1091
        %v1093 = vpop.f32.mrb[0].mxu0
        %v1094 = vadd.f32 %v888, %v1093
        %v1095 = vpop.f32.mrb[0].mxu0
        %v1096 = vadd.f32 %v892, %v1095
        %1097 = vmatprep.mubr.bf16.mxu0 %v822
        %1098 = vmatmul.mubr.bf16.gmra.mrb[0].mxu0 %v821
        %v1099 = vpop.f32.mrb[0].mxu0
        %v1100 = vadd.f32 %v888, %v1099
        %v1101 = vpop.f32.mrb[0].mxu0
        %v1102 = vadd.f32 %v892, %v1101
        %v1103 = vpop.f32.mrb[0].mxu0
        %v1104 = vadd.f32 %v888, %v1103
        %v1105 = vpop.f32.mrb[0].mxu0
        %v1106 = vadd.f32 %v892, %v1105
        %1107 = vmatprep.mubr.bf16.mxu0 %v824
        %1108 = vmatmul.mubr.bf16.gmra.mrb[0].mxu0 %v823
        %v1109 = vpop.f32.mrb[0].mxu0
        %v1110 = vadd.f32 %v888, %v1109
        %v1111 = vpop.f32.mrb[0].mxu0
        %v1112 = vadd.f32 %v892, %v1111
        %v1113 = vpop.f32.mrb[0].mxu0
        %v1114 = vadd.f32 %v888, %v1113
        %v1115 = vpop.f32.mrb[0].mxu0
        %v1116 = vadd.f32 %v892, %v1115
        %1117 = vmatprep.mubr.bf16.mxu0 %v826
        %1118 = vmatmul.mubr.bf16.gmra.mrb[0].mxu0 %v825
        %v1119 = vpop.f32.mrb[0].mxu0
        %v1120 = vadd.f32 %v888, %v1119
        %v1121 = vpop.f32.mrb[0].mxu0
        %v1122 = vadd.f32 %v892, %v1121
        %v1123 = vpop.f32.mrb[0].mxu0
        %v1124 = vadd.f32 %v888, %v1123
        %v1125 = vpop.f32.mrb[0].mxu0
        %v1126 = vadd.f32 %v892, %v1125
        %1127 = vmatprep.mubr.bf16.mxu0 %v828
        %1128 = vmatmul.mubr.bf16.gmra.mrb[0].mxu0 %v827
        %v1129 = vpop.f32.mrb[0].mxu0
        %v1130 = vadd.f32 %v888, %v1129
        %v1131 = vpop.f32.mrb[0].mxu0
        %v1132 = vadd.f32 %v892, %v1131
        %v1133 = vpop.f32.mrb[0].mxu0
        %v1134 = vadd.f32 %v888, %v1133
        %v1135 = vpop.f32.mrb[0].mxu0
        %v1136 = vadd.f32 %v892, %v1135
        %1137 = vmatprep.mubr.bf16.mxu0 %v830
        %1138 = vmatmul.mubr.bf16.gmra.mrb[0].mxu0 %v829
        %v1139 = vpop.f32.mrb[0].mxu0
        %v1140 = vadd.f32 %v888, %v1139
        %v1141 = vpop.f32.mrb[0].mxu0
        %v1142 = vadd.f32 %v892, %v1141
        %v1143 = vpop.f32.mrb[0].mxu0
        %v1144 = vadd.f32 %v888, %v1143
        %v1145 = vpop.f32.mrb[0].mxu0
        %v1146 = vadd.f32 %v892, %v1145
        %1147 = vmatprep.mubr.bf16.mxu0 %v832
        %1148 = vmatmul.mubr.bf16.gmra.mrb[0].mxu0 %v831
        %v1149 = vpop.f32.mrb[0].mxu0
        %v1150 = vadd.f32 %v888, %v1149
        %v1151 = vpop.f32.mrb[0].mxu0
        %v1152 = vadd.f32 %v892, %v1151
        %v1153 = vpop.f32.mrb[0].mxu0
        %v1154 = vadd.f32 %v888, %v1153
        %v1155 = vpop.f32.mrb[0].mxu0
        %v1156 = vadd.f32 %v892, %v1155
        %1157 = vmatprep.mubr.bf16.mxu0 %v834
        %1158 = vmatmul.mubr.bf16.gmra.mrb[0].mxu0 %v833
        %v1159 = vpop.f32.mrb[0].mxu0
        %v1160 = vadd.f32 %v888, %v1159
        %v1161 = vpop.f32.mrb[0].mxu0
        %v1162 = vadd.f32 %v892, %v1161
        %v1163 = vpop.f32.mrb[0].mxu0
        %v1164 = vadd.f32 %v888, %v1163
        %v1165 = vpop.f32.mrb[0].mxu0
        %v1166 = vadd.f32 %v892, %v1165
        %1167 = vmatprep.mubr.bf16.mxu0 %v836
        %1168 = vmatmul.mubr.bf16.gmra.mrb[0].mxu0 %v835
        %v1169 = vpop.f32.mrb[0].mxu0
        %v1170 = vadd.f32 %v888, %v1169
        %v1171 = vpop.f32.mrb[0].mxu0
        %v1172 = vadd.f32 %v892, %v1171
        %v1173 = vpop.f32.mrb[0].mxu0
        %v1174 = vadd.f32 %v888, %v1173
        %v1175 = vpop.f32.mrb[0].mxu0
        %v1176 = vadd.f32 %v892, %v1175
        %1177 = vmatprep.mubr.bf16.mxu0 %v838
        %1178 = vmatmul.mubr.bf16.gmra.mrb[0].mxu0 %v837
        %v1179 = vpop.f32.mrb[0].mxu0
        %v1180 = vadd.f32 %v888, %v1179
        %v1181 = vpop.f32.mrb[0].mxu0
        %v1182 = vadd.f32 %v892, %v1181
        %v1183 = vpop.f32.mrb[0].mxu0
        %v1184 = vadd.f32 %v888, %v1183
        %v1185 = vpop.f32.mrb[0].mxu0
        %v1186 = vadd.f32 %v892, %v1185
        %1187 = vmatprep.mubr.bf16.mxu0 %v840
        %1188 = vmatmul.mubr.bf16.gmra.mrb[0].mxu0 %v839
        %v1189 = vpop.f32.mrb[0].mxu0
        %v1190 = vadd.f32 %v888, %v1189
        %v1191 = vpop.f32.mrb[0].mxu0
        %v1192 = vadd.f32 %v892, %v1191
        %v1193 = vpop.f32.mrb[0].mxu0
        %v1194 = vadd.f32 %v888, %v1193
        %v1195 = vpop.f32.mrb[0].mxu0
        %v1196 = vadd.f32 %v892, %v1195
        %1197 = vmatprep.mubr.bf16.mxu0 %v842
        %1198 = vmatmul.mubr.bf16.gmra.mrb[0].mxu0 %v841
        %v1199 = vpop.f32.mrb[0].mxu0
        %v1200 = vadd.f32 %v888, %v1199
        %v1201 = vpop.f32.mrb[0].mxu0
        %v1202 = vadd.f32 %v892, %v1201
        %v1203 = vpop.f32.mrb[0].mxu0
        %v1204 = vadd.f32 %v888, %v1203
        %v1205 = vpop.f32.mrb[0].mxu0
        %v1206 = vadd.f32 %v892, %v1205
        %1207 = vmatprep.mubr.bf16.mxu0 %v844
        %1208 = vmatmul.mubr.bf16.gmra.mrb[0].mxu0 %v843
        %v1209 = vpop.f32.mrb[0].mxu0
        %v1210 = vadd.f32 %v888, %v1209
        %v1211 = vpop.f32.mrb[0].mxu0
        %v1212 = vadd.f32 %v892, %v1211
        %v1213 = vpop.f32.mrb[0].mxu0
        %v1214 = vadd.f32 %v888, %v1213
        %v1215 = vpop.f32.mrb[0].mxu0
        %v1216 = vadd.f32 %v892, %v1215
        %1217 = vmatprep.mubr.bf16.mxu0 %v846
        %1218 = vmatmul.mubr.bf16.gmra.mrb[0].mxu0 %v845
        %v1219 = vpop.f32.mrb[0].mxu0
        %v1220 = vadd.f32 %v888, %v1219
        %v1221 = vpop.f32.mrb[0].mxu0
        %v1222 = vadd.f32 %v892, %v1221
        %v1223 = vpop.f32.mrb[0].mxu0
        %v1224 = vadd.f32 %v888, %v1223
        %v1225 = vpop.f32.mrb[0].mxu0
        %v1226 = vadd.f32 %v892, %v1225
        %1227 = vmatprep.mubr.bf16.mxu0 %v848
        %1228 = vmatmul.mubr.bf16.gmra.mrb[0].mxu0 %v847
        %v1229 = vpop.f32.mrb[0].mxu0
        %v1230 = vadd.f32 %v888, %v1229
        %v1231 = vpop.f32.mrb[0].mxu0
        %v1232 = vadd.f32 %v892, %v1231
        %v1233 = vpop.f32.mrb[0].mxu0
        %v1234 = vadd.f32 %v888, %v1233
        %v1235 = vpop.f32.mrb[0].mxu0
        %v1236 = vadd.f32 %v892, %v1235
        %1237 = vmatprep.mubr.bf16.mxu0 %v850
        %1238 = vmatmul.mubr.bf16.gmra.mrb[0].mxu0 %v849
        %v1239 = vpop.f32.mrb[0].mxu0
        %v1240 = vadd.f32 %v888, %v1239
        %v1241 = vpop.f32.mrb[0].mxu0
        %v1242 = vadd.f32 %v892, %v1241
        %v1243 = vpop.f32.mrb[0].mxu0
        %v1244 = vadd.f32 %v888, %v1243
        %v1245 = vpop.f32.mrb[0].mxu0
        %v1246 = vadd.f32 %v892, %v1245
        %1247 = vdwg.mxu0
        %v1248 = vmax.f32 %v1090, 0.0
        %v1249 = vmax.f32 %v1092, 0.0
        %v1250 = vmax.f32 %v1094, 0.0
        %v1251 = vmax.f32 %v1096, 0.0
        %v1252 = vmax.f32 %v1100, 0.0
        %v1253 = vmax.f32 %v1102, 0.0
        %v1254 = vmax.f32 %v1104, 0.0
        %v1255 = vmax.f32 %v1106, 0.0
        %v1256 = vmax.f32 %v1110, 0.0
        %v1257 = vmax.f32 %v1112, 0.0
        %v1258 = vmax.f32 %v1114, 0.0
        %v1259 = vmax.f32 %v1116, 0.0
        %v1260 = vmax.f32 %v1120, 0.0
        %v1261 = vmax.f32 %v1122, 0.0
        %v1262 = vmax.f32 %v1124, 0.0
        %v1263 = vmax.f32 %v1126, 0.0
        %v1264 = vmax.f32 %v1130, 0.0
        %v1265 = vmax.f32 %v1132, 0.0
        %v1266 = vmax.f32 %v1134, 0.0
        %v1267 = vmax.f32 %v1136, 0.0
        %v1268 = vmax.f32 %v1140, 0.0
        %v1269 = vmax.f32 %v1142, 0.0
        %v1270 = vmax.f32 %v1144, 0.0
        %v1271 = vmax.f32 %v1146, 0.0
        %v1272 = vmax.f32 %v1150, 0.0
        %v1273 = vmax.f32 %v1152, 0.0
        %v1274 = vmax.f32 %v1154, 0.0
        %v1275 = vmax.f32 %v1156, 0.0
        %v1276 = vmax.f32 %v1160, 0.0
        %v1277 = vmax.f32 %v1162, 0.0
        %v1278 = vmax.f32 %v1164, 0.0
        %v1279 = vmax.f32 %v1166, 0.0
        %v1280 = vmax.f32 %v1170, 0.0
        %v1281 = vmax.f32 %v1172, 0.0
        %v1282 = vmax.f32 %v1174, 0.0
        %v1283 = vmax.f32 %v1176, 0.0
        %v1284 = vmax.f32 %v1180, 0.0
        %v1285 = vmax.f32 %v1182, 0.0
        %v1286 = vmax.f32 %v1184, 0.0
        %v1287 = vmax.f32 %v1186, 0.0
        %v1288 = vmax.f32 %v1190, 0.0
        %v1289 = vmax.f32 %v1192, 0.0
        %v1290 = vmax.f32 %v1194, 0.0
        %v1291 = vmax.f32 %v1196, 0.0
        %v1292 = vmax.f32 %v1200, 0.0
        %v1293 = vmax.f32 %v1202, 0.0
        %v1294 = vmax.f32 %v1204, 0.0
        %v1295 = vmax.f32 %v1206, 0.0
        %v1296 = vmax.f32 %v1210, 0.0
        %v1297 = vmax.f32 %v1212, 0.0
        %v1298 = vmax.f32 %v1214, 0.0
        %v1299 = vmax.f32 %v1216, 0.0
        %v1300 = vmax.f32 %v1220, 0.0
        %v1301 = vmax.f32 %v1222, 0.0
        %v1302 = vmax.f32 %v1224, 0.0
        %v1303 = vmax.f32 %v1226, 0.0
        %v1304 = vmax.f32 %v1230, 0.0
        %v1305 = vmax.f32 %v1232, 0.0
        %v1306 = vmax.f32 %v1234, 0.0
        %v1307 = vmax.f32 %v1236, 0.0
        %v1308 = vmax.f32 %v1240, 0.0
        %v1309 = vmax.f32 %v1242, 0.0
        %v1310 = vmax.f32 %v1244, 0.0
        %v1311 = vmax.f32 %v1246, 0.0
        %v1312 = vpack.c.bf16 %v1250, %v1248
        %v1313 = vpack.c.bf16 %v1251, %v1249
        %v1314 = vpack.c.bf16 %v1254, %v1252
        %v1315 = vpack.c.bf16 %v1255, %v1253
        %v1316 = vpack.c.bf16 %v1258, %v1256
        %v1317 = vpack.c.bf16 %v1259, %v1257
        %v1318 = vpack.c.bf16 %v1262, %v1260
        %v1319 = vpack.c.bf16 %v1263, %v1261
        %v1320 = vpack.c.bf16 %v1266, %v1264
        %v1321 = vpack.c.bf16 %v1267, %v1265
        %v1322 = vpack.c.bf16 %v1270, %v1268
        %v1323 = vpack.c.bf16 %v1271, %v1269
        %v1324 = vpack.c.bf16 %v1274, %v1272
        %v1325 = vpack.c.bf16 %v1275, %v1273
        %v1326 = vpack.c.bf16 %v1278, %v1276
        %v1327 = vpack.c.bf16 %v1279, %v1277
        %v1328 = vpack.c.bf16 %v1282, %v1280
        %v1329 = vpack.c.bf16 %v1283, %v1281
        %v1330 = vpack.c.bf16 %v1286, %v1284
        %v1331 = vpack.c.bf16 %v1287, %v1285
        %v1332 = vpack.c.bf16 %v1290, %v1288
        %v1333 = vpack.c.bf16 %v1291, %v1289
        %v1334 = vpack.c.bf16 %v1294, %v1292
        %v1335 = vpack.c.bf16 %v1295, %v1293
        %v1336 = vpack.c.bf16 %v1298, %v1296
        %v1337 = vpack.c.bf16 %v1299, %v1297
        %v1338 = vpack.c.bf16 %v1302, %v1300
        %v1339 = vpack.c.bf16 %v1303, %v1301
        %v1340 = vpack.c.bf16 %v1306, %v1304
        %v1341 = vpack.c.bf16 %v1307, %v1305
        %v1342 = vpack.c.bf16 %v1310, %v1308
        %v1343 = vpack.c.bf16 %v1311, %v1309
        %v1344 = vld [vmem:[#allocation2] sm:$0xff]
        %v1345 = vld [vmem:[#allocation2 + $0x8] sm:$0xff]
        %v1346 = vld [vmem:[#allocation2 + $0x10] sm:$0xff]
        %v1347 = vld [vmem:[#allocation2 + $0x18] sm:$0xff]
        %v1348 = vld [vmem:[#allocation2 + $0x20] sm:$0xff]
        %v1349 = vld [vmem:[#allocation2 + $0x28] sm:$0xff]
        %v1350 = vld [vmem:[#allocation2 + $0x30] sm:$0xff]
        %v1351 = vld [vmem:[#allocation2 + $0x38] sm:$0xff]
        %v1352 = vld [vmem:[#allocation2 + $0x40] sm:$0xff]
        %v1353 = vld [vmem:[#allocation2 + $0x48] sm:$0xff]
        %v1354 = vld [vmem:[#allocation2 + $0x50] sm:$0xff]
        %v1355 = vld [vmem:[#allocation2 + $0x58] sm:$0xff]
        %v1356 = vld [vmem:[#allocation2 + $0x60] sm:$0xff]
        %v1357 = vld [vmem:[#allocation2 + $0x68] sm:$0xff]
        %v1358 = vld [vmem:[#allocation2 + $0x70] sm:$0xff]
        %v1359 = vld [vmem:[#allocation2 + $0x78] sm:$0xff]
        %v1360 = vld [vmem:[#allocation2 + $0x80] sm:$0xff]
        %v1361 = vld [vmem:[#allocation2 + $0x88] sm:$0xff]
        %v1362 = vld [vmem:[#allocation2 + $0x90] sm:$0xff]
        %v1363 = vld [vmem:[#allocation2 + $0x98] sm:$0xff]
        %v1364 = vld [vmem:[#allocation2 + $0xa0] sm:$0xff]
        %v1365 = vld [vmem:[#allocation2 + $0xa8] sm:$0xff]
        %v1366 = vld [vmem:[#allocation2 + $0xb0] sm:$0xff]
        %v1367 = vld [vmem:[#allocation2 + $0xb8] sm:$0xff]
        %v1368 = vld [vmem:[#allocation2 + $0xc0] sm:$0xff]
        %v1369 = vld [vmem:[#allocation2 + $0xc8] sm:$0xff]
        %v1370 = vld [vmem:[#allocation2 + $0xd0] sm:$0xff]
        %v1371 = vld [vmem:[#allocation2 + $0xd8] sm:$0xff]
        %v1372 = vld [vmem:[#allocation2 + $0xe0] sm:$0xff]
        %v1373 = vld [vmem:[#allocation2 + $0xe8] sm:$0xff]
        %v1374 = vld [vmem:[#allocation2 + $0xf0] sm:$0xff]
        %v1375 = vld [vmem:[#allocation2 + $0xf8] sm:$0xff]
        %v1376 = vld [vmem:[%s6] sm:$0x3]
        %v1378 = vlaneseq
        %v1379 = vshrl.u32 %v1378, 7
        %v1380 = vsub.s32 0, %v1379
        %v1381 = vrot.slane %v1376, %v1380
        %v1382 = vlaneseq
        %v1383 = vshrl.u32 %v1382, 7
        %v1384 = vsub.s32 1, %v1383
        %v1385 = vrot.slane %v1376, %v1384
        %v1420 = vunpack.c.l.b16 %v1344
        %v1421 = vunpack.c.h.b16 %v1344
        %v1422 = vunpack.c.l.b16 %v1345
        %v1423 = vunpack.c.h.b16 %v1345
        %v1424 = vunpack.c.l.b16 %v1346
        %v1425 = vunpack.c.h.b16 %v1346
        %v1426 = vunpack.c.l.b16 %v1347
        %v1427 = vunpack.c.h.b16 %v1347
        %v1428 = vunpack.c.l.b16 %v1348
        %v1429 = vunpack.c.h.b16 %v1348
        %v1430 = vunpack.c.l.b16 %v1349
        %v1431 = vunpack.c.h.b16 %v1349
        %v1432 = vunpack.c.l.b16 %v1350
        %v1433 = vunpack.c.h.b16 %v1350
        %v1434 = vunpack.c.l.b16 %v1351
        %v1435 = vunpack.c.h.b16 %v1351
        %v1436 = vunpack.c.l.b16 %v1352
        %v1437 = vunpack.c.h.b16 %v1352
        %v1438 = vunpack.c.l.b16 %v1353
        %v1439 = vunpack.c.h.b16 %v1353
        %v1440 = vunpack.c.l.b16 %v1354
        %v1441 = vunpack.c.h.b16 %v1354
        %v1442 = vunpack.c.l.b16 %v1355
        %v1443 = vunpack.c.h.b16 %v1355
        %v1444 = vunpack.c.l.b16 %v1356
        %v1445 = vunpack.c.h.b16 %v1356
        %v1446 = vunpack.c.l.b16 %v1357
        %v1447 = vunpack.c.h.b16 %v1357
        %v1448 = vunpack.c.l.b16 %v1358
        %v1449 = vunpack.c.h.b16 %v1358
        %v1450 = vunpack.c.l.b16 %v1359
        %v1451 = vunpack.c.h.b16 %v1359
        %v1452 = vunpack.c.l.b16 %v1360
        %v1453 = vunpack.c.h.b16 %v1360
        %v1454 = vunpack.c.l.b16 %v1361
        %v1455 = vunpack.c.h.b16 %v1361
        %v1456 = vunpack.c.l.b16 %v1362
        %v1457 = vunpack.c.h.b16 %v1362
        %v1458 = vunpack.c.l.b16 %v1363
        %v1459 = vunpack.c.h.b16 %v1363
        %v1460 = vunpack.c.l.b16 %v1364
        %v1461 = vunpack.c.h.b16 %v1364
        %v1462 = vunpack.c.l.b16 %v1365
        %v1463 = vunpack.c.h.b16 %v1365
        %v1464 = vunpack.c.l.b16 %v1366
        %v1465 = vunpack.c.h.b16 %v1366
        %v1466 = vunpack.c.l.b16 %v1367
        %v1467 = vunpack.c.h.b16 %v1367
        %v1468 = vunpack.c.l.b16 %v1368
        %v1469 = vunpack.c.h.b16 %v1368
        %v1470 = vunpack.c.l.b16 %v1369
        %v1471 = vunpack.c.h.b16 %v1369
        %v1472 = vunpack.c.l.b16 %v1370
        %v1473 = vunpack.c.h.b16 %v1370
        %v1474 = vunpack.c.l.b16 %v1371
        %v1475 = vunpack.c.h.b16 %v1371
        %v1476 = vunpack.c.l.b16 %v1372
        %v1477 = vunpack.c.h.b16 %v1372
        %v1478 = vunpack.c.l.b16 %v1373
        %v1479 = vunpack.c.h.b16 %v1373
        %v1480 = vunpack.c.l.b16 %v1374
        %v1481 = vunpack.c.h.b16 %v1374
        %v1482 = vunpack.c.l.b16 %v1375
        %v1483 = vunpack.c.h.b16 %v1375
        %v1484 = vpack.c.b16 %v1422, %v1420
        %v1485 = vpack.c.b16 %v1423, %v1421
        %v1486 = vpack.c.b16 %v1426, %v1424
        %v1487 = vpack.c.b16 %v1427, %v1425
        %v1488 = vpack.c.b16 %v1430, %v1428
        %v1489 = vpack.c.b16 %v1431, %v1429
        %v1490 = vpack.c.b16 %v1434, %v1432
        %v1491 = vpack.c.b16 %v1435, %v1433
        %v1492 = vpack.c.b16 %v1438, %v1436
        %v1493 = vpack.c.b16 %v1439, %v1437
        %v1494 = vpack.c.b16 %v1442, %v1440
        %v1495 = vpack.c.b16 %v1443, %v1441
        %v1496 = vpack.c.b16 %v1446, %v1444
        %v1497 = vpack.c.b16 %v1447, %v1445
        %v1498 = vpack.c.b16 %v1450, %v1448
        %v1499 = vpack.c.b16 %v1451, %v1449
        %v1500 = vpack.c.b16 %v1454, %v1452
        %v1501 = vpack.c.b16 %v1455, %v1453
        %v1502 = vpack.c.b16 %v1458, %v1456
        %v1503 = vpack.c.b16 %v1459, %v1457
        %v1504 = vpack.c.b16 %v1462, %v1460
        %v1505 = vpack.c.b16 %v1463, %v1461
        %v1506 = vpack.c.b16 %v1466, %v1464
        %v1507 = vpack.c.b16 %v1467, %v1465
        %v1508 = vpack.c.b16 %v1470, %v1468
        %v1509 = vpack.c.b16 %v1471, %v1469
        %v1510 = vpack.c.b16 %v1474, %v1472
        %v1511 = vpack.c.b16 %v1475, %v1473
        %v1512 = vpack.c.b16 %v1478, %v1476
        %v1513 = vpack.c.b16 %v1479, %v1477
        %v1514 = vpack.c.b16 %v1482, %v1480
        %v1515 = vpack.c.b16 %v1483, %v1481
        %1548 = vmatprep.subr.bf16.mxu0 %v1485
        %1549 = vmatpush1.bf16.msra.mxu0 %v1484
        %1550 = vmatprep.subr.bf16.mxu0 %v1487
        %1551 = vmatpush1.bf16.msra.mxu0 %v1486
        %1552 = vmatprep.subr.bf16.mxu0 %v1489
        %1553 = vmatpush1.bf16.msra.mxu0 %v1488
        %1554 = vmatprep.subr.bf16.mxu0 %v1491
        %1555 = vmatpush1.bf16.msra.mxu0 %v1490
        %1556 = vmatprep.subr.bf16.mxu0 %v1493
        %1557 = vmatpush1.bf16.msra.mxu0 %v1492
        %1558 = vmatprep.subr.bf16.mxu0 %v1495
        %1559 = vmatpush1.bf16.msra.mxu0 %v1494
        %1560 = vmatprep.subr.bf16.mxu0 %v1497
        %1561 = vmatpush1.bf16.msra.mxu0 %v1496
        %1562 = vmatprep.subr.bf16.mxu0 %v1499
        %1563 = vmatpush1.bf16.msra.mxu0 %v1498
        %1564 = vmatprep.subr.bf16.mxu0 %v1501
        %1565 = vmatpush1.bf16.msra.mxu0 %v1500
        %1566 = vmatprep.subr.bf16.mxu0 %v1503
        %1567 = vmatpush1.bf16.msra.mxu0 %v1502
        %1568 = vmatprep.subr.bf16.mxu0 %v1505
        %1569 = vmatpush1.bf16.msra.mxu0 %v1504
        %1570 = vmatprep.subr.bf16.mxu0 %v1507
        %1571 = vmatpush1.bf16.msra.mxu0 %v1506
        %1572 = vmatprep.subr.bf16.mxu0 %v1509
        %1573 = vmatpush1.bf16.msra.mxu0 %v1508
        %1574 = vmatprep.subr.bf16.mxu0 %v1511
        %1575 = vmatpush1.bf16.msra.mxu0 %v1510
        %1576 = vmatprep.subr.bf16.mxu0 %v1513
        %1577 = vmatpush1.bf16.msra.mxu0 %v1512
        %1578 = vmatprep.subr.bf16.mxu0 %v1515
        %1579 = vmatpush1.bf16.msra.mxu0 %v1514
        %1580 = vmatprep.mubr.bf16.mxu0 %v1313
        %1581 = vmatmul.mubr.bf16.gmra.mrb[0].mxu0 %v1312
        %v1582 = vpop.f32.mrb[0].mxu0
        %v1583 = vadd.f32 %v1381, %v1582
        %v1584 = vpop.f32.mrb[0].mxu0
        %v1585 = vadd.f32 %v1385, %v1584
        %v1586 = vpop.f32.mrb[0].mxu0
        %v1587 = vadd.f32 %v1381, %v1586
        %v1588 = vpop.f32.mrb[0].mxu0
        %v1589 = vadd.f32 %v1385, %v1588
        %1590 = vmatprep.mubr.bf16.mxu0 %v1315
        %1591 = vmatmul.mubr.bf16.gmra.mrb[0].mxu0 %v1314
        %v1592 = vpop.f32.mrb[0].mxu0
        %v1593 = vadd.f32 %v1381, %v1592
        %v1594 = vpop.f32.mrb[0].mxu0
        %v1595 = vadd.f32 %v1385, %v1594
        %v1596 = vpop.f32.mrb[0].mxu0
        %v1597 = vadd.f32 %v1381, %v1596
        %v1598 = vpop.f32.mrb[0].mxu0
        %v1599 = vadd.f32 %v1385, %v1598
        %1600 = vmatprep.mubr.bf16.mxu0 %v1317
        %1601 = vmatmul.mubr.bf16.gmra.mrb[0].mxu0 %v1316
        %v1602 = vpop.f32.mrb[0].mxu0
        %v1603 = vadd.f32 %v1381, %v1602
        %v1604 = vpop.f32.mrb[0].mxu0
        %v1605 = vadd.f32 %v1385, %v1604
        %v1606 = vpop.f32.mrb[0].mxu0
        %v1607 = vadd.f32 %v1381, %v1606
        %v1608 = vpop.f32.mrb[0].mxu0
        %v1609 = vadd.f32 %v1385, %v1608
        %1610 = vmatprep.mubr.bf16.mxu0 %v1319
        %1611 = vmatmul.mubr.bf16.gmra.mrb[0].mxu0 %v1318
        %v1612 = vpop.f32.mrb[0].mxu0
        %v1613 = vadd.f32 %v1381, %v1612
        %v1614 = vpop.f32.mrb[0].mxu0
        %v1615 = vadd.f32 %v1385, %v1614
        %v1616 = vpop.f32.mrb[0].mxu0
        %v1617 = vadd.f32 %v1381, %v1616
        %v1618 = vpop.f32.mrb[0].mxu0
        %v1619 = vadd.f32 %v1385, %v1618
        %1620 = vmatprep.mubr.bf16.mxu0 %v1321
        %1621 = vmatmul.mubr.bf16.gmra.mrb[0].mxu0 %v1320
        %v1622 = vpop.f32.mrb[0].mxu0
        %v1623 = vadd.f32 %v1381, %v1622
        %v1624 = vpop.f32.mrb[0].mxu0
        %v1625 = vadd.f32 %v1385, %v1624
        %v1626 = vpop.f32.mrb[0].mxu0
        %v1627 = vadd.f32 %v1381, %v1626
        %v1628 = vpop.f32.mrb[0].mxu0
        %v1629 = vadd.f32 %v1385, %v1628
        %1630 = vmatprep.mubr.bf16.mxu0 %v1323
        %1631 = vmatmul.mubr.bf16.gmra.mrb[0].mxu0 %v1322
        %v1632 = vpop.f32.mrb[0].mxu0
        %v1633 = vadd.f32 %v1381, %v1632
        %v1634 = vpop.f32.mrb[0].mxu0
        %v1635 = vadd.f32 %v1385, %v1634
        %v1636 = vpop.f32.mrb[0].mxu0
        %v1637 = vadd.f32 %v1381, %v1636
        %v1638 = vpop.f32.mrb[0].mxu0
        %v1639 = vadd.f32 %v1385, %v1638
        %1640 = vmatprep.mubr.bf16.mxu0 %v1325
        %1641 = vmatmul.mubr.bf16.gmra.mrb[0].mxu0 %v1324
        %v1642 = vpop.f32.mrb[0].mxu0
        %v1643 = vadd.f32 %v1381, %v1642
        %v1644 = vpop.f32.mrb[0].mxu0
        %v1645 = vadd.f32 %v1385, %v1644
        %v1646 = vpop.f32.mrb[0].mxu0
        %v1647 = vadd.f32 %v1381, %v1646
        %v1648 = vpop.f32.mrb[0].mxu0
        %v1649 = vadd.f32 %v1385, %v1648
        %1650 = vmatprep.mubr.bf16.mxu0 %v1327
        %1651 = vmatmul.mubr.bf16.gmra.mrb[0].mxu0 %v1326
        %v1652 = vpop.f32.mrb[0].mxu0
        %v1653 = vadd.f32 %v1381, %v1652
        %v1654 = vpop.f32.mrb[0].mxu0
        %v1655 = vadd.f32 %v1385, %v1654
        %v1656 = vpop.f32.mrb[0].mxu0
        %v1657 = vadd.f32 %v1381, %v1656
        %v1658 = vpop.f32.mrb[0].mxu0
        %v1659 = vadd.f32 %v1385, %v1658
        %1660 = vmatprep.mubr.bf16.mxu0 %v1329
        %1661 = vmatmul.mubr.bf16.gmra.mrb[0].mxu0 %v1328
        %v1662 = vpop.f32.mrb[0].mxu0
        %v1663 = vadd.f32 %v1381, %v1662
        %v1664 = vpop.f32.mrb[0].mxu0
        %v1665 = vadd.f32 %v1385, %v1664
        %v1666 = vpop.f32.mrb[0].mxu0
        %v1667 = vadd.f32 %v1381, %v1666
        %v1668 = vpop.f32.mrb[0].mxu0
        %v1669 = vadd.f32 %v1385, %v1668
        %1670 = vmatprep.mubr.bf16.mxu0 %v1331
        %1671 = vmatmul.mubr.bf16.gmra.mrb[0].mxu0 %v1330
        %v1672 = vpop.f32.mrb[0].mxu0
        %v1673 = vadd.f32 %v1381, %v1672
        %v1674 = vpop.f32.mrb[0].mxu0
        %v1675 = vadd.f32 %v1385, %v1674
        %v1676 = vpop.f32.mrb[0].mxu0
        %v1677 = vadd.f32 %v1381, %v1676
        %v1678 = vpop.f32.mrb[0].mxu0
        %v1679 = vadd.f32 %v1385, %v1678
        %1680 = vmatprep.mubr.bf16.mxu0 %v1333
        %1681 = vmatmul.mubr.bf16.gmra.mrb[0].mxu0 %v1332
        %v1682 = vpop.f32.mrb[0].mxu0
        %v1683 = vadd.f32 %v1381, %v1682
        %v1684 = vpop.f32.mrb[0].mxu0
        %v1685 = vadd.f32 %v1385, %v1684
        %v1686 = vpop.f32.mrb[0].mxu0
        %v1687 = vadd.f32 %v1381, %v1686
        %v1688 = vpop.f32.mrb[0].mxu0
        %v1689 = vadd.f32 %v1385, %v1688
        %1690 = vmatprep.mubr.bf16.mxu0 %v1335
        %1691 = vmatmul.mubr.bf16.gmra.mrb[0].mxu0 %v1334
        %v1692 = vpop.f32.mrb[0].mxu0
        %v1693 = vadd.f32 %v1381, %v1692
        %v1694 = vpop.f32.mrb[0].mxu0
        %v1695 = vadd.f32 %v1385, %v1694
        %v1696 = vpop.f32.mrb[0].mxu0
        %v1697 = vadd.f32 %v1381, %v1696
        %v1698 = vpop.f32.mrb[0].mxu0
        %v1699 = vadd.f32 %v1385, %v1698
        %1700 = vmatprep.mubr.bf16.mxu0 %v1337
        %1701 = vmatmul.mubr.bf16.gmra.mrb[0].mxu0 %v1336
        %v1702 = vpop.f32.mrb[0].mxu0
        %v1703 = vadd.f32 %v1381, %v1702
        %v1704 = vpop.f32.mrb[0].mxu0
        %v1705 = vadd.f32 %v1385, %v1704
        %v1706 = vpop.f32.mrb[0].mxu0
        %v1707 = vadd.f32 %v1381, %v1706
        %v1708 = vpop.f32.mrb[0].mxu0
        %v1709 = vadd.f32 %v1385, %v1708
        %1710 = vmatprep.mubr.bf16.mxu0 %v1339
        %1711 = vmatmul.mubr.bf16.gmra.mrb[0].mxu0 %v1338
        %v1712 = vpop.f32.mrb[0].mxu0
        %v1713 = vadd.f32 %v1381, %v1712
        %v1714 = vpop.f32.mrb[0].mxu0
        %v1715 = vadd.f32 %v1385, %v1714
        %v1716 = vpop.f32.mrb[0].mxu0
        %v1717 = vadd.f32 %v1381, %v1716
        %v1718 = vpop.f32.mrb[0].mxu0
        %v1719 = vadd.f32 %v1385, %v1718
        %1720 = vmatprep.mubr.bf16.mxu0 %v1341
        %1721 = vmatmul.mubr.bf16.gmra.mrb[0].mxu0 %v1340
        %v1722 = vpop.f32.mrb[0].mxu0
        %v1723 = vadd.f32 %v1381, %v1722
        %v1724 = vpop.f32.mrb[0].mxu0
        %v1725 = vadd.f32 %v1385, %v1724
        %v1726 = vpop.f32.mrb[0].mxu0
        %v1727 = vadd.f32 %v1381, %v1726
        %v1728 = vpop.f32.mrb[0].mxu0
        %v1729 = vadd.f32 %v1385, %v1728
        %1730 = vmatprep.mubr.bf16.mxu0 %v1343
        %1731 = vmatmul.mubr.bf16.gmra.mrb[0].mxu0 %v1342
        %v1732 = vpop.f32.mrb[0].mxu0
        %v1733 = vadd.f32 %v1381, %v1732
        %v1734 = vpop.f32.mrb[0].mxu0
        %v1735 = vadd.f32 %v1385, %v1734
        %v1736 = vpop.f32.mrb[0].mxu0
        %v1737 = vadd.f32 %v1381, %v1736
        %v1738 = vpop.f32.mrb[0].mxu0
        %v1739 = vadd.f32 %v1385, %v1738
        %1740 = vdwg.mxu0
        %v1741 = vmax.f32 %v1583, 0.0
        %v1742 = vmax.f32 %v1585, 0.0
        %v1743 = vmax.f32 %v1587, 0.0
        %v1744 = vmax.f32 %v1589, 0.0
        %v1745 = vmax.f32 %v1593, 0.0
        %v1746 = vmax.f32 %v1595, 0.0
        %v1747 = vmax.f32 %v1597, 0.0
        %v1748 = vmax.f32 %v1599, 0.0
        %v1749 = vmax.f32 %v1603, 0.0
        %v1750 = vmax.f32 %v1605, 0.0
        %v1751 = vmax.f32 %v1607, 0.0
        %v1752 = vmax.f32 %v1609, 0.0
        %v1753 = vmax.f32 %v1613, 0.0
        %v1754 = vmax.f32 %v1615, 0.0
        %v1755 = vmax.f32 %v1617, 0.0
        %v1756 = vmax.f32 %v1619, 0.0
        %v1757 = vmax.f32 %v1623, 0.0
        %v1758 = vmax.f32 %v1625, 0.0
        %v1759 = vmax.f32 %v1627, 0.0
        %v1760 = vmax.f32 %v1629, 0.0
        %v1761 = vmax.f32 %v1633, 0.0
        %v1762 = vmax.f32 %v1635, 0.0
        %v1763 = vmax.f32 %v1637, 0.0
        %v1764 = vmax.f32 %v1639, 0.0
        %v1765 = vmax.f32 %v1643, 0.0
        %v1766 = vmax.f32 %v1645, 0.0
        %v1767 = vmax.f32 %v1647, 0.0
        %v1768 = vmax.f32 %v1649, 0.0
        %v1769 = vmax.f32 %v1653, 0.0
        %v1770 = vmax.f32 %v1655, 0.0
        %v1771 = vmax.f32 %v1657, 0.0
        %v1772 = vmax.f32 %v1659, 0.0
        %v1773 = vmax.f32 %v1663, 0.0
        %v1774 = vmax.f32 %v1665, 0.0
        %v1775 = vmax.f32 %v1667, 0.0
        %v1776 = vmax.f32 %v1669, 0.0
        %v1777 = vmax.f32 %v1673, 0.0
        %v1778 = vmax.f32 %v1675, 0.0
        %v1779 = vmax.f32 %v1677, 0.0
        %v1780 = vmax.f32 %v1679, 0.0
        %v1781 = vmax.f32 %v1683, 0.0
        %v1782 = vmax.f32 %v1685, 0.0
        %v1783 = vmax.f32 %v1687, 0.0
        %v1784 = vmax.f32 %v1689, 0.0
        %v1785 = vmax.f32 %v1693, 0.0
        %v1786 = vmax.f32 %v1695, 0.0
        %v1787 = vmax.f32 %v1697, 0.0
        %v1788 = vmax.f32 %v1699, 0.0
        %v1789 = vmax.f32 %v1703, 0.0
        %v1790 = vmax.f32 %v1705, 0.0
        %v1791 = vmax.f32 %v1707, 0.0
        %v1792 = vmax.f32 %v1709, 0.0
        %v1793 = vmax.f32 %v1713, 0.0
        %v1794 = vmax.f32 %v1715, 0.0
        %v1795 = vmax.f32 %v1717, 0.0
        %v1796 = vmax.f32 %v1719, 0.0
        %v1797 = vmax.f32 %v1723, 0.0
        %v1798 = vmax.f32 %v1725, 0.0
        %v1799 = vmax.f32 %v1727, 0.0
        %v1800 = vmax.f32 %v1729, 0.0
        %v1801 = vmax.f32 %v1733, 0.0
        %v1802 = vmax.f32 %v1735, 0.0
        %v1803 = vmax.f32 %v1737, 0.0
        %v1804 = vmax.f32 %v1739, 0.0
        %v1805 = vpack.c.bf16 %v1743, %v1741
        %v1806 = vpack.c.bf16 %v1744, %v1742
        %v1807 = vpack.c.bf16 %v1747, %v1745
        %v1808 = vpack.c.bf16 %v1748, %v1746
        %v1809 = vpack.c.bf16 %v1751, %v1749
        %v1810 = vpack.c.bf16 %v1752, %v1750
        %v1811 = vpack.c.bf16 %v1755, %v1753
        %v1812 = vpack.c.bf16 %v1756, %v1754
        %v1813 = vpack.c.bf16 %v1759, %v1757
        %v1814 = vpack.c.bf16 %v1760, %v1758
        %v1815 = vpack.c.bf16 %v1763, %v1761
        %v1816 = vpack.c.bf16 %v1764, %v1762
        %v1817 = vpack.c.bf16 %v1767, %v1765
        %v1818 = vpack.c.bf16 %v1768, %v1766
        %v1819 = vpack.c.bf16 %v1771, %v1769
        %v1820 = vpack.c.bf16 %v1772, %v1770
        %v1821 = vpack.c.bf16 %v1775, %v1773
        %v1822 = vpack.c.bf16 %v1776, %v1774
        %v1823 = vpack.c.bf16 %v1779, %v1777
        %v1824 = vpack.c.bf16 %v1780, %v1778
        %v1825 = vpack.c.bf16 %v1783, %v1781
        %v1826 = vpack.c.bf16 %v1784, %v1782
        %v1827 = vpack.c.bf16 %v1787, %v1785
        %v1828 = vpack.c.bf16 %v1788, %v1786
        %v1829 = vpack.c.bf16 %v1791, %v1789
        %v1830 = vpack.c.bf16 %v1792, %v1790
        %v1831 = vpack.c.bf16 %v1795, %v1793
        %v1832 = vpack.c.bf16 %v1796, %v1794
        %v1833 = vpack.c.bf16 %v1799, %v1797
        %v1834 = vpack.c.bf16 %v1800, %v1798
        %v1835 = vpack.c.bf16 %v1803, %v1801
        %v1836 = vpack.c.bf16 %v1804, %v1802
        %v1837 = vld [vmem:[#allocation5] sm:$0xf]
        %v1838 = vld [vmem:[#allocation5 + $0x4] sm:$0xf]
        %v1839 = vld [vmem:[#allocation5 + $0x8] sm:$0xf]
        %v1840 = vld [vmem:[#allocation5 + $0xc] sm:$0xf]
        %v1841 = vld [vmem:[#allocation5 + $0x10] sm:$0xf]
        %v1842 = vld [vmem:[#allocation5 + $0x14] sm:$0xf]
        %v1843 = vld [vmem:[#allocation5 + $0x18] sm:$0xf]
        %v1844 = vld [vmem:[#allocation5 + $0x1c] sm:$0xf]
        %v1845 = vld [vmem:[#allocation5 + $0x20] sm:$0xf]
        %v1846 = vld [vmem:[#allocation5 + $0x24] sm:$0xf]
        %v1847 = vld [vmem:[#allocation5 + $0x28] sm:$0xf]
        %v1848 = vld [vmem:[#allocation5 + $0x2c] sm:$0xf]
        %v1849 = vld [vmem:[#allocation5 + $0x30] sm:$0xf]
        %v1850 = vld [vmem:[#allocation5 + $0x34] sm:$0xf]
        %v1851 = vld [vmem:[#allocation5 + $0x38] sm:$0xf]
        %v1852 = vld [vmem:[#allocation5 + $0x3c] sm:$0xf]
        %v1853 = vld [vmem:[#allocation5 + $0x40] sm:$0xf]
        %v1854 = vld [vmem:[#allocation5 + $0x44] sm:$0xf]
        %v1855 = vld [vmem:[#allocation5 + $0x48] sm:$0xf]
        %v1856 = vld [vmem:[#allocation5 + $0x4c] sm:$0xf]
        %v1857 = vld [vmem:[#allocation5 + $0x50] sm:$0xf]
        %v1858 = vld [vmem:[#allocation5 + $0x54] sm:$0xf]
        %v1859 = vld [vmem:[#allocation5 + $0x58] sm:$0xf]
        %v1860 = vld [vmem:[#allocation5 + $0x5c] sm:$0xf]
        %v1861 = vld [vmem:[#allocation5 + $0x60] sm:$0xf]
        %v1862 = vld [vmem:[#allocation5 + $0x64] sm:$0xf]
        %v1863 = vld [vmem:[#allocation5 + $0x68] sm:$0xf]
        %v1864 = vld [vmem:[#allocation5 + $0x6c] sm:$0xf]
        %v1865 = vld [vmem:[#allocation5 + $0x70] sm:$0xf]
        %v1866 = vld [vmem:[#allocation5 + $0x74] sm:$0xf]
        %v1867 = vld [vmem:[#allocation5 + $0x78] sm:$0xf]
        %v1868 = vld [vmem:[#allocation5 + $0x7c] sm:$0xf]
        %v1869 = vld [vmem:[%s8] sm:$0x1]
        %v1871 = vlaneseq
        %v1872 = vshrl.u32 %v1871, 7
        %v1873 = vsub.s32 0, %v1872
        %v1874 = vrot.slane %v1869, %v1873
        %v1908 = vunpack.c.l.b16 %v1837
        %v1909 = vunpack.c.l.b16 %v1838
        %v1910 = vunpack.c.l.b16 %v1839
        %v1911 = vunpack.c.l.b16 %v1840
        %v1912 = vunpack.c.l.b16 %v1841
        %v1913 = vunpack.c.l.b16 %v1842
        %v1914 = vunpack.c.l.b16 %v1843
        %v1915 = vunpack.c.l.b16 %v1844
        %v1916 = vunpack.c.l.b16 %v1845
        %v1917 = vunpack.c.l.b16 %v1846
        %v1918 = vunpack.c.l.b16 %v1847
        %v1919 = vunpack.c.l.b16 %v1848
        %v1920 = vunpack.c.l.b16 %v1849
        %v1921 = vunpack.c.l.b16 %v1850
        %v1922 = vunpack.c.l.b16 %v1851
        %v1923 = vunpack.c.l.b16 %v1852
        %v1924 = vunpack.c.l.b16 %v1853
        %v1925 = vunpack.c.l.b16 %v1854
        %v1926 = vunpack.c.l.b16 %v1855
        %v1927 = vunpack.c.l.b16 %v1856
        %v1928 = vunpack.c.l.b16 %v1857
        %v1929 = vunpack.c.l.b16 %v1858
        %v1930 = vunpack.c.l.b16 %v1859
        %v1931 = vunpack.c.l.b16 %v1860
        %v1932 = vunpack.c.l.b16 %v1861
        %v1933 = vunpack.c.l.b16 %v1862
        %v1934 = vunpack.c.l.b16 %v1863
        %v1935 = vunpack.c.l.b16 %v1864
        %v1936 = vunpack.c.l.b16 %v1865
        %v1937 = vunpack.c.l.b16 %v1866
        %v1938 = vunpack.c.l.b16 %v1867
        %v1939 = vunpack.c.l.b16 %v1868
        %v1940 = vpack.c.b16 %v1909, %v1908
        %v1941 = vpack.c.b16 %v1911, %v1910
        %v1942 = vpack.c.b16 %v1913, %v1912
        %v1943 = vpack.c.b16 %v1915, %v1914
        %v1944 = vpack.c.b16 %v1917, %v1916
        %v1945 = vpack.c.b16 %v1919, %v1918
        %v1946 = vpack.c.b16 %v1921, %v1920
        %v1947 = vpack.c.b16 %v1923, %v1922
        %v1948 = vpack.c.b16 %v1925, %v1924
        %v1949 = vpack.c.b16 %v1927, %v1926
        %v1950 = vpack.c.b16 %v1929, %v1928
        %v1951 = vpack.c.b16 %v1931, %v1930
        %v1952 = vpack.c.b16 %v1933, %v1932
        %v1953 = vpack.c.b16 %v1935, %v1934
        %v1954 = vpack.c.b16 %v1937, %v1936
        %v1955 = vpack.c.b16 %v1939, %v1938
        %1972 = vmatprep.subr.bf16.mxu0 0
        %1973 = vmatpush1.bf16.msra.mxu0 %v1940
        %1974 = vmatprep.subr.bf16.mxu0 0
        %1975 = vmatpush1.bf16.msra.mxu0 %v1941
        %1976 = vmatprep.subr.bf16.mxu0 0
        %1977 = vmatpush1.bf16.msra.mxu0 %v1942
        %1978 = vmatprep.subr.bf16.mxu0 0
        %1979 = vmatpush1.bf16.msra.mxu0 %v1943
        %1980 = vmatprep.subr.bf16.mxu0 0
        %1981 = vmatpush1.bf16.msra.mxu0 %v1944
        %1982 = vmatprep.subr.bf16.mxu0 0
        %1983 = vmatpush1.bf16.msra.mxu0 %v1945
        %1984 = vmatprep.subr.bf16.mxu0 0
        %1985 = vmatpush1.bf16.msra.mxu0 %v1946
        %1986 = vmatprep.subr.bf16.mxu0 0
        %1987 = vmatpush1.bf16.msra.mxu0 %v1947
        %1988 = vmatprep.subr.bf16.mxu0 0
        %1989 = vmatpush1.bf16.msra.mxu0 %v1948
        %1990 = vmatprep.subr.bf16.mxu0 0
        %1991 = vmatpush1.bf16.msra.mxu0 %v1949
        %1992 = vmatprep.subr.bf16.mxu0 0
        %1993 = vmatpush1.bf16.msra.mxu0 %v1950
        %1994 = vmatprep.subr.bf16.mxu0 0
        %1995 = vmatpush1.bf16.msra.mxu0 %v1951
        %1996 = vmatprep.subr.bf16.mxu0 0
        %1997 = vmatpush1.bf16.msra.mxu0 %v1952
        %1998 = vmatprep.subr.bf16.mxu0 0
        %1999 = vmatpush1.bf16.msra.mxu0 %v1953
        %2000 = vmatprep.subr.bf16.mxu0 0
        %2001 = vmatpush1.bf16.msra.mxu0 %v1954
        %2002 = vmatprep.subr.bf16.mxu0 0
        %2003 = vmatpush1.bf16.msra.mxu0 %v1955
        %2004 = vmatprep.mubr.bf16.mxu0 %v1806
        %2005 = vmatmul.mubr.bf16.gmra.mrb[0].mxu0 %v1805
        %v2006 = vpop.f32.mrb[0].mxu0
        %v2007 = vadd.f32 %v1874, %v2006
        %v2008 = vpop.f32.mrb[0].mxu0
        %v2009 = vpop.f32.mrb[0].mxu0
        %v2010 = vadd.f32 %v1874, %v2009
        %v2011 = vpop.f32.mrb[0].mxu0
        %2012 = vmatprep.mubr.bf16.mxu0 %v1808
        %2013 = vmatmul.mubr.bf16.gmra.mrb[0].mxu0 %v1807
        %v2014 = vpop.f32.mrb[0].mxu0
        %v2015 = vadd.f32 %v1874, %v2014
        %v2016 = vpop.f32.mrb[0].mxu0
        %v2017 = vpop.f32.mrb[0].mxu0
        %v2018 = vadd.f32 %v1874, %v2017
        %v2019 = vpop.f32.mrb[0].mxu0
        %2020 = vmatprep.mubr.bf16.mxu0 %v1810
        %2021 = vmatmul.mubr.bf16.gmra.mrb[0].mxu0 %v1809
        %v2022 = vpop.f32.mrb[0].mxu0
        %v2023 = vadd.f32 %v1874, %v2022
        %v2024 = vpop.f32.mrb[0].mxu0
        %v2025 = vpop.f32.mrb[0].mxu0
        %v2026 = vadd.f32 %v1874, %v2025
        %v2027 = vpop.f32.mrb[0].mxu0
        %2028 = vmatprep.mubr.bf16.mxu0 %v1812
        %2029 = vmatmul.mubr.bf16.gmra.mrb[0].mxu0 %v1811
        %v2030 = vpop.f32.mrb[0].mxu0
        %v2031 = vadd.f32 %v1874, %v2030
        %v2032 = vpop.f32.mrb[0].mxu0
        %v2033 = vpop.f32.mrb[0].mxu0
        %v2034 = vadd.f32 %v1874, %v2033
        %v2035 = vpop.f32.mrb[0].mxu0
        %2036 = vmatprep.mubr.bf16.mxu0 %v1814
        %2037 = vmatmul.mubr.bf16.gmra.mrb[0].mxu0 %v1813
        %v2038 = vpop.f32.mrb[0].mxu0
        %v2039 = vadd.f32 %v1874, %v2038
        %v2040 = vpop.f32.mrb[0].mxu0
        %v2041 = vpop.f32.mrb[0].mxu0
        %v2042 = vadd.f32 %v1874, %v2041
        %v2043 = vpop.f32.mrb[0].mxu0
        %2044 = vmatprep.mubr.bf16.mxu0 %v1816
        %2045 = vmatmul.mubr.bf16.gmra.mrb[0].mxu0 %v1815
        %v2046 = vpop.f32.mrb[0].mxu0
        %v2047 = vadd.f32 %v1874, %v2046
        %v2048 = vpop.f32.mrb[0].mxu0
        %v2049 = vpop.f32.mrb[0].mxu0
        %v2050 = vadd.f32 %v1874, %v2049
        %v2051 = vpop.f32.mrb[0].mxu0
        %2052 = vmatprep.mubr.bf16.mxu0 %v1818
        %2053 = vmatmul.mubr.bf16.gmra.mrb[0].mxu0 %v1817
        %v2054 = vpop.f32.mrb[0].mxu0
        %v2055 = vadd.f32 %v1874, %v2054
        %v2056 = vpop.f32.mrb[0].mxu0
        %v2057 = vpop.f32.mrb[0].mxu0
        %v2058 = vadd.f32 %v1874, %v2057
        %v2059 = vpop.f32.mrb[0].mxu0
        %2060 = vmatprep.mubr.bf16.mxu0 %v1820
        %2061 = vmatmul.mubr.bf16.gmra.mrb[0].mxu0 %v1819
        %v2062 = vpop.f32.mrb[0].mxu0
        %v2063 = vadd.f32 %v1874, %v2062
        %v2064 = vpop.f32.mrb[0].mxu0
        %v2065 = vpop.f32.mrb[0].mxu0
        %v2066 = vadd.f32 %v1874, %v2065
        %v2067 = vpop.f32.mrb[0].mxu0
        %2068 = vmatprep.mubr.bf16.mxu0 %v1822
        %2069 = vmatmul.mubr.bf16.gmra.mrb[0].mxu0 %v1821
        %v2070 = vpop.f32.mrb[0].mxu0
        %v2071 = vadd.f32 %v1874, %v2070
        %v2072 = vpop.f32.mrb[0].mxu0
        %v2073 = vpop.f32.mrb[0].mxu0
        %v2074 = vadd.f32 %v1874, %v2073
        %v2075 = vpop.f32.mrb[0].mxu0
        %2076 = vmatprep.mubr.bf16.mxu0 %v1824
        %2077 = vmatmul.mubr.bf16.gmra.mrb[0].mxu0 %v1823
        %v2078 = vpop.f32.mrb[0].mxu0
        %v2079 = vadd.f32 %v1874, %v2078
        %v2080 = vpop.f32.mrb[0].mxu0
        %v2081 = vpop.f32.mrb[0].mxu0
        %v2082 = vadd.f32 %v1874, %v2081
        %v2083 = vpop.f32.mrb[0].mxu0
        %2084 = vmatprep.mubr.bf16.mxu0 %v1826
        %2085 = vmatmul.mubr.bf16.gmra.mrb[0].mxu0 %v1825
        %v2086 = vpop.f32.mrb[0].mxu0
        %v2087 = vadd.f32 %v1874, %v2086
        %v2088 = vpop.f32.mrb[0].mxu0
        %v2089 = vpop.f32.mrb[0].mxu0
        %v2090 = vadd.f32 %v1874, %v2089
        %v2091 = vpop.f32.mrb[0].mxu0
        %2092 = vmatprep.mubr.bf16.mxu0 %v1828
        %2093 = vmatmul.mubr.bf16.gmra.mrb[0].mxu0 %v1827
        %v2094 = vpop.f32.mrb[0].mxu0
        %v2095 = vadd.f32 %v1874, %v2094
        %v2096 = vpop.f32.mrb[0].mxu0
        %v2097 = vpop.f32.mrb[0].mxu0
        %v2098 = vadd.f32 %v1874, %v2097
        %v2099 = vpop.f32.mrb[0].mxu0
        %2100 = vmatprep.mubr.bf16.mxu0 %v1830
        %2101 = vmatmul.mubr.bf16.gmra.mrb[0].mxu0 %v1829
        %v2102 = vpop.f32.mrb[0].mxu0
        %v2103 = vadd.f32 %v1874, %v2102
        %v2104 = vpop.f32.mrb[0].mxu0
        %v2105 = vpop.f32.mrb[0].mxu0
        %v2106 = vadd.f32 %v1874, %v2105
        %v2107 = vpop.f32.mrb[0].mxu0
        %2108 = vmatprep.mubr.bf16.mxu0 %v1832
        %2109 = vmatmul.mubr.bf16.gmra.mrb[0].mxu0 %v1831
        %v2110 = vpop.f32.mrb[0].mxu0
        %v2111 = vadd.f32 %v1874, %v2110
        %v2112 = vpop.f32.mrb[0].mxu0
        %v2113 = vpop.f32.mrb[0].mxu0
        %v2114 = vadd.f32 %v1874, %v2113
        %v2115 = vpop.f32.mrb[0].mxu0
        %2116 = vmatprep.mubr.bf16.mxu0 %v1834
        %2117 = vmatmul.mubr.bf16.gmra.mrb[0].mxu0 %v1833
        %v2118 = vpop.f32.mrb[0].mxu0
        %v2119 = vadd.f32 %v1874, %v2118
        %v2120 = vpop.f32.mrb[0].mxu0
        %v2121 = vpop.f32.mrb[0].mxu0
        %v2122 = vadd.f32 %v1874, %v2121
        %v2123 = vpop.f32.mrb[0].mxu0
        %2124 = vmatprep.mubr.bf16.mxu0 %v1836
        %2125 = vmatmul.mubr.bf16.gmra.mrb[0].mxu0 %v1835
        %v2126 = vpop.f32.mrb[0].mxu0
        %v2127 = vadd.f32 %v1874, %v2126
        %v2128 = vpop.f32.mrb[0].mxu0
        %v2129 = vpop.f32.mrb[0].mxu0
        %v2130 = vadd.f32 %v1874, %v2129
        %v2131 = vpop.f32.mrb[0].mxu0
        %2132 = vdwg.mxu0
        %v2133 = vlaneseq
        %v2134 = vand.u32 %v2133, 127
        %vm2135 = vcmp.lt.s32.totalorder %v2134, 8
        %v2136 = vsel %vm2135, %v2007, -1e+30
        %v2137 = vsel %vm2135, %v2010, -1e+30
        %v2138 = vsel %vm2135, %v2015, -1e+30
        %v2139 = vsel %vm2135, %v2018, -1e+30
        %v2140 = vsel %vm2135, %v2023, -1e+30
        %v2141 = vsel %vm2135, %v2026, -1e+30
        %v2142 = vsel %vm2135, %v2031, -1e+30
        %v2143 = vsel %vm2135, %v2034, -1e+30
        %v2144 = vsel %vm2135, %v2039, -1e+30
        %v2145 = vsel %vm2135, %v2042, -1e+30
        %v2146 = vsel %vm2135, %v2047, -1e+30
        %v2147 = vsel %vm2135, %v2050, -1e+30
        %v2148 = vsel %vm2135, %v2055, -1e+30
        %v2149 = vsel %vm2135, %v2058, -1e+30
        %v2150 = vsel %vm2135, %v2063, -1e+30
        %v2151 = vsel %vm2135, %v2066, -1e+30
        %v2152 = vsel %vm2135, %v2071, -1e+30
        %v2153 = vsel %vm2135, %v2074, -1e+30
        %v2154 = vsel %vm2135, %v2079, -1e+30
        %v2155 = vsel %vm2135, %v2082, -1e+30
        %v2156 = vsel %vm2135, %v2087, -1e+30
        %v2157 = vsel %vm2135, %v2090, -1e+30
        %v2158 = vsel %vm2135, %v2095, -1e+30
        %v2159 = vsel %vm2135, %v2098, -1e+30
        %v2160 = vsel %vm2135, %v2103, -1e+30
        %v2161 = vsel %vm2135, %v2106, -1e+30
        %v2162 = vsel %vm2135, %v2111, -1e+30
        %v2163 = vsel %vm2135, %v2114, -1e+30
        %v2164 = vsel %vm2135, %v2119, -1e+30
        %v2165 = vsel %vm2135, %v2122, -1e+30
        %v2166 = vsel %vm2135, %v2127, -1e+30
        %v2167 = vsel %vm2135, %v2130, -1e+30
        %2168 = vmax.xlane.f32.xlu0 %v2136
        %v2169 = vpop.xlane.xlu0 %2168
        %2170 = vmax.xlane.f32.xlu0 %v2137
        %v2171 = vpop.xlane.xlu0 %2170
        %2172 = vmax.xlane.f32.xlu0 %v2138
        %v2173 = vpop.xlane.xlu0 %2172
        %2174 = vmax.xlane.f32.xlu0 %v2139
        %v2175 = vpop.xlane.xlu0 %2174
        %2176 = vmax.xlane.f32.xlu0 %v2140
        %v2177 = vpop.xlane.xlu0 %2176
        %2178 = vmax.xlane.f32.xlu0 %v2141
        %v2179 = vpop.xlane.xlu0 %2178
        %2180 = vmax.xlane.f32.xlu0 %v2142
        %v2181 = vpop.xlane.xlu0 %2180
        %2182 = vmax.xlane.f32.xlu0 %v2143
        %v2183 = vpop.xlane.xlu0 %2182
        %2184 = vmax.xlane.f32.xlu0 %v2144
        %v2185 = vpop.xlane.xlu0 %2184
        %2186 = vmax.xlane.f32.xlu0 %v2145
        %v2187 = vpop.xlane.xlu0 %2186
        %2188 = vmax.xlane.f32.xlu0 %v2146
        %v2189 = vpop.xlane.xlu0 %2188
        %2190 = vmax.xlane.f32.xlu0 %v2147
        %v2191 = vpop.xlane.xlu0 %2190
        %2192 = vmax.xlane.f32.xlu0 %v2148
        %v2193 = vpop.xlane.xlu0 %2192
        %2194 = vmax.xlane.f32.xlu0 %v2149
        %v2195 = vpop.xlane.xlu0 %2194
        %2196 = vmax.xlane.f32.xlu0 %v2150
        %v2197 = vpop.xlane.xlu0 %2196
        %2198 = vmax.xlane.f32.xlu0 %v2151
        %v2199 = vpop.xlane.xlu0 %2198
        %2200 = vmax.xlane.f32.xlu0 %v2152
        %v2201 = vpop.xlane.xlu0 %2200
        %2202 = vmax.xlane.f32.xlu0 %v2153
        %v2203 = vpop.xlane.xlu0 %2202
        %2204 = vmax.xlane.f32.xlu0 %v2154
        %v2205 = vpop.xlane.xlu0 %2204
        %2206 = vmax.xlane.f32.xlu0 %v2155
        %v2207 = vpop.xlane.xlu0 %2206
        %2208 = vmax.xlane.f32.xlu0 %v2156
        %v2209 = vpop.xlane.xlu0 %2208
        %2210 = vmax.xlane.f32.xlu0 %v2157
        %v2211 = vpop.xlane.xlu0 %2210
        %2212 = vmax.xlane.f32.xlu0 %v2158
        %v2213 = vpop.xlane.xlu0 %2212
        %2214 = vmax.xlane.f32.xlu0 %v2159
        %v2215 = vpop.xlane.xlu0 %2214
        %2216 = vmax.xlane.f32.xlu0 %v2160
        %v2217 = vpop.xlane.xlu0 %2216
        %2218 = vmax.xlane.f32.xlu0 %v2161
        %v2219 = vpop.xlane.xlu0 %2218
        %2220 = vmax.xlane.f32.xlu0 %v2162
        %v2221 = vpop.xlane.xlu0 %2220
        %2222 = vmax.xlane.f32.xlu0 %v2163
        %v2223 = vpop.xlane.xlu0 %2222
        %2224 = vmax.xlane.f32.xlu0 %v2164
        %v2225 = vpop.xlane.xlu0 %2224
        %2226 = vmax.xlane.f32.xlu0 %v2165
        %v2227 = vpop.xlane.xlu0 %2226
        %2228 = vmax.xlane.f32.xlu0 %v2166
        %v2229 = vpop.xlane.xlu0 %2228
        %2230 = vmax.xlane.f32.xlu0 %v2167
        %v2231 = vpop.xlane.xlu0 %2230
        %v2232 = vsub.f32 %v2136, %v2169
        %v2233 = vsub.f32 %v2137, %v2171
        %v2234 = vsub.f32 %v2138, %v2173
        %v2235 = vsub.f32 %v2139, %v2175
        %v2236 = vsub.f32 %v2140, %v2177
        %v2237 = vsub.f32 %v2141, %v2179
        %v2238 = vsub.f32 %v2142, %v2181
        %v2239 = vsub.f32 %v2143, %v2183
        %v2240 = vsub.f32 %v2144, %v2185
        %v2241 = vsub.f32 %v2145, %v2187
        %v2242 = vsub.f32 %v2146, %v2189
        %v2243 = vsub.f32 %v2147, %v2191
        %v2244 = vsub.f32 %v2148, %v2193
        %v2245 = vsub.f32 %v2149, %v2195
        %v2246 = vsub.f32 %v2150, %v2197
        %v2247 = vsub.f32 %v2151, %v2199
        %v2248 = vsub.f32 %v2152, %v2201
        %v2249 = vsub.f32 %v2153, %v2203
        %v2250 = vsub.f32 %v2154, %v2205
        %v2251 = vsub.f32 %v2155, %v2207
        %v2252 = vsub.f32 %v2156, %v2209
        %v2253 = vsub.f32 %v2157, %v2211
        %v2254 = vsub.f32 %v2158, %v2213
        %v2255 = vsub.f32 %v2159, %v2215
        %v2256 = vsub.f32 %v2160, %v2217
        %v2257 = vsub.f32 %v2161, %v2219
        %v2258 = vsub.f32 %v2162, %v2221
        %v2259 = vsub.f32 %v2163, %v2223
        %v2260 = vsub.f32 %v2164, %v2225
        %v2261 = vsub.f32 %v2165, %v2227
        %v2262 = vsub.f32 %v2166, %v2229
        %v2263 = vsub.f32 %v2167, %v2231
        %v2264 = vmul.f32 %v2232, 1.442695
        %v2265 = vpow.pop %v2264
        %v2266 = vmul.f32 %v2233, 1.442695
        %v2267 = vpow.pop %v2266
        %v2268 = vmul.f32 %v2234, 1.442695
        %v2269 = vpow.pop %v2268
        %v2270 = vmul.f32 %v2235, 1.442695
        %v2271 = vpow.pop %v2270
        %v2272 = vmul.f32 %v2236, 1.442695
        %v2273 = vpow.pop %v2272
        %v2274 = vmul.f32 %v2237, 1.442695
        %v2275 = vpow.pop %v2274
        %v2276 = vmul.f32 %v2238, 1.442695
        %v2277 = vpow.pop %v2276
        %v2278 = vmul.f32 %v2239, 1.442695
        %v2279 = vpow.pop %v2278
        %v2280 = vmul.f32 %v2240, 1.442695
        %v2281 = vpow.pop %v2280
        %v2282 = vmul.f32 %v2241, 1.442695
        %v2283 = vpow.pop %v2282
        %v2284 = vmul.f32 %v2242, 1.442695
        %v2285 = vpow.pop %v2284
        %v2286 = vmul.f32 %v2243, 1.442695
        %v2287 = vpow.pop %v2286
        %v2288 = vmul.f32 %v2244, 1.442695
        %v2289 = vpow.pop %v2288
        %v2290 = vmul.f32 %v2245, 1.442695
        %v2291 = vpow.pop %v2290
        %v2292 = vmul.f32 %v2246, 1.442695
        %v2293 = vpow.pop %v2292
        %v2294 = vmul.f32 %v2247, 1.442695
        %v2295 = vpow.pop %v2294
        %v2296 = vmul.f32 %v2248, 1.442695
        %v2297 = vpow.pop %v2296
        %v2298 = vmul.f32 %v2249, 1.442695
        %v2299 = vpow.pop %v2298
        %v2300 = vmul.f32 %v2250, 1.442695
        %v2301 = vpow.pop %v2300
        %v2302 = vmul.f32 %v2251, 1.442695
        %v2303 = vpow.pop %v2302
        %v2304 = vmul.f32 %v2252, 1.442695
        %v2305 = vpow.pop %v2304
        %v2306 = vmul.f32 %v2253, 1.442695
        %v2307 = vpow.pop %v2306
        %v2308 = vmul.f32 %v2254, 1.442695
        %v2309 = vpow.pop %v2308
        %v2310 = vmul.f32 %v2255, 1.442695
        %v2311 = vpow.pop %v2310
        %v2312 = vmul.f32 %v2256, 1.442695
        %v2313 = vpow.pop %v2312
        %v2314 = vmul.f32 %v2257, 1.442695
        %v2315 = vpow.pop %v2314
        %v2316 = vmul.f32 %v2258, 1.442695
        %v2317 = vpow.pop %v2316
        %v2318 = vmul.f32 %v2259, 1.442695
        %v2319 = vpow.pop %v2318
        %v2320 = vmul.f32 %v2260, 1.442695
        %v2321 = vpow.pop %v2320
        %v2322 = vmul.f32 %v2261, 1.442695
        %v2323 = vpow.pop %v2322
        %v2324 = vmul.f32 %v2262, 1.442695
        %v2325 = vpow.pop %v2324
        %v2326 = vmul.f32 %v2263, 1.442695
        %v2327 = vpow.pop %v2326
        %2328 = vadd.xlane.f32.xlu0 %v2265
        %v2329 = vpop.xlane.xlu0 %2328
        %2330 = vadd.xlane.f32.xlu0 %v2267
        %v2331 = vpop.xlane.xlu0 %2330
        %2332 = vadd.xlane.f32.xlu0 %v2269
        %v2333 = vpop.xlane.xlu0 %2332
        %2334 = vadd.xlane.f32.xlu0 %v2271
        %v2335 = vpop.xlane.xlu0 %2334
        %2336 = vadd.xlane.f32.xlu0 %v2273
        %v2337 = vpop.xlane.xlu0 %2336
        %2338 = vadd.xlane.f32.xlu0 %v2275
        %v2339 = vpop.xlane.xlu0 %2338
        %2340 = vadd.xlane.f32.xlu0 %v2277
        %v2341 = vpop.xlane.xlu0 %2340
        %2342 = vadd.xlane.f32.xlu0 %v2279
        %v2343 = vpop.xlane.xlu0 %2342
        %2344 = vadd.xlane.f32.xlu0 %v2281
        %v2345 = vpop.xlane.xlu0 %2344
        %2346 = vadd.xlane.f32.xlu0 %v2283
        %v2347 = vpop.xlane.xlu0 %2346
        %2348 = vadd.xlane.f32.xlu0 %v2285
        %v2349 = vpop.xlane.xlu0 %2348
        %2350 = vadd.xlane.f32.xlu0 %v2287
        %v2351 = vpop.xlane.xlu0 %2350
        %2352 = vadd.xlane.f32.xlu0 %v2289
        %v2353 = vpop.xlane.xlu0 %2352
        %2354 = vadd.xlane.f32.xlu0 %v2291
        %v2355 = vpop.xlane.xlu0 %2354
        %2356 = vadd.xlane.f32.xlu0 %v2293
        %v2357 = vpop.xlane.xlu0 %2356
        %2358 = vadd.xlane.f32.xlu0 %v2295
        %v2359 = vpop.xlane.xlu0 %2358
        %2360 = vadd.xlane.f32.xlu0 %v2297
        %v2361 = vpop.xlane.xlu0 %2360
        %2362 = vadd.xlane.f32.xlu0 %v2299
        %v2363 = vpop.xlane.xlu0 %2362
        %2364 = vadd.xlane.f32.xlu0 %v2301
        %v2365 = vpop.xlane.xlu0 %2364
        %2366 = vadd.xlane.f32.xlu0 %v2303
        %v2367 = vpop.xlane.xlu0 %2366
        %2368 = vadd.xlane.f32.xlu0 %v2305
        %v2369 = vpop.xlane.xlu0 %2368
        %2370 = vadd.xlane.f32.xlu0 %v2307
        %v2371 = vpop.xlane.xlu0 %2370
        %2372 = vadd.xlane.f32.xlu0 %v2309
        %v2373 = vpop.xlane.xlu0 %2372
        %2374 = vadd.xlane.f32.xlu0 %v2311
        %v2375 = vpop.xlane.xlu0 %2374
        %2376 = vadd.xlane.f32.xlu0 %v2313
        %v2377 = vpop.xlane.xlu0 %2376
        %2378 = vadd.xlane.f32.xlu0 %v2315
        %v2379 = vpop.xlane.xlu0 %2378
        %2380 = vadd.xlane.f32.xlu0 %v2317
        %v2381 = vpop.xlane.xlu0 %2380
        %2382 = vadd.xlane.f32.xlu0 %v2319
        %v2383 = vpop.xlane.xlu0 %2382
        %2384 = vadd.xlane.f32.xlu0 %v2321
        %v2385 = vpop.xlane.xlu0 %2384
        %2386 = vadd.xlane.f32.xlu0 %v2323
        %v2387 = vpop.xlane.xlu0 %2386
        %2388 = vadd.xlane.f32.xlu0 %v2325
        %v2389 = vpop.xlane.xlu0 %2388
        %2390 = vadd.xlane.f32.xlu0 %v2327
        %v2391 = vpop.xlane.xlu0 %2390
        %v2392 = vrcp.pop %v2329
        %v2393 = vrcp.pop %v2331
        %v2394 = vrcp.pop %v2333
        %v2395 = vrcp.pop %v2335
        %v2396 = vrcp.pop %v2337
        %v2397 = vrcp.pop %v2339
        %v2398 = vrcp.pop %v2341
        %v2399 = vrcp.pop %v2343
        %v2400 = vrcp.pop %v2345
        %v2401 = vrcp.pop %v2347
        %v2402 = vrcp.pop %v2349
        %v2403 = vrcp.pop %v2351
        %v2404 = vrcp.pop %v2353
        %v2405 = vrcp.pop %v2355
        %v2406 = vrcp.pop %v2357
        %v2407 = vrcp.pop %v2359
        %v2408 = vrcp.pop %v2361
        %v2409 = vrcp.pop %v2363
        %v2410 = vrcp.pop %v2365
        %v2411 = vrcp.pop %v2367
        %v2412 = vrcp.pop %v2369
        %v2413 = vrcp.pop %v2371
        %v2414 = vrcp.pop %v2373
        %v2415 = vrcp.pop %v2375
        %v2416 = vrcp.pop %v2377
        %v2417 = vrcp.pop %v2379
        %v2418 = vrcp.pop %v2381
        %v2419 = vrcp.pop %v2383
        %v2420 = vrcp.pop %v2385
        %v2421 = vrcp.pop %v2387
        %v2422 = vrcp.pop %v2389
        %v2423 = vrcp.pop %v2391
        %v2424 = vmul.f32 %v2265, %v2392
        %v2425 = vmul.f32 %v2267, %v2393
        %v2426 = vmul.f32 %v2269, %v2394
        %v2427 = vmul.f32 %v2271, %v2395
        %v2428 = vmul.f32 %v2273, %v2396
        %v2429 = vmul.f32 %v2275, %v2397
        %v2430 = vmul.f32 %v2277, %v2398
        %v2431 = vmul.f32 %v2279, %v2399
        %v2432 = vmul.f32 %v2281, %v2400
        %v2433 = vmul.f32 %v2283, %v2401
        %v2434 = vmul.f32 %v2285, %v2402
        %v2435 = vmul.f32 %v2287, %v2403
        %v2436 = vmul.f32 %v2289, %v2404
        %v2437 = vmul.f32 %v2291, %v2405
        %v2438 = vmul.f32 %v2293, %v2406
        %v2439 = vmul.f32 %v2295, %v2407
        %v2440 = vmul.f32 %v2297, %v2408
        %v2441 = vmul.f32 %v2299, %v2409
        %v2442 = vmul.f32 %v2301, %v2410
        %v2443 = vmul.f32 %v2303, %v2411
        %v2444 = vmul.f32 %v2305, %v2412
        %v2445 = vmul.f32 %v2307, %v2413
        %v2446 = vmul.f32 %v2309, %v2414
        %v2447 = vmul.f32 %v2311, %v2415
        %v2448 = vmul.f32 %v2313, %v2416
        %v2449 = vmul.f32 %v2315, %v2417
        %v2450 = vmul.f32 %v2317, %v2418
        %v2451 = vmul.f32 %v2319, %v2419
        %v2452 = vmul.f32 %v2321, %v2420
        %v2453 = vmul.f32 %v2323, %v2421
        %v2454 = vmul.f32 %v2325, %v2422
        %v2455 = vmul.f32 %v2327, %v2423
        %vm2456 = vcmp.eq.s32.totalorder %v2134, 8
        %v2457 = vsel %vm2456, %v2007, 0.0
        %v2458 = vsel %vm2456, %v2010, 0.0
        %v2459 = vsel %vm2456, %v2015, 0.0
        %v2460 = vsel %vm2456, %v2018, 0.0
        %v2461 = vsel %vm2456, %v2023, 0.0
        %v2462 = vsel %vm2456, %v2026, 0.0
        %v2463 = vsel %vm2456, %v2031, 0.0
        %v2464 = vsel %vm2456, %v2034, 0.0
        %v2465 = vsel %vm2456, %v2039, 0.0
        %v2466 = vsel %vm2456, %v2042, 0.0
        %v2467 = vsel %vm2456, %v2047, 0.0
        %v2468 = vsel %vm2456, %v2050, 0.0
        %v2469 = vsel %vm2456, %v2055, 0.0
        %v2470 = vsel %vm2456, %v2058, 0.0
        %v2471 = vsel %vm2456, %v2063, 0.0
        %v2472 = vsel %vm2456, %v2066, 0.0
        %v2473 = vsel %vm2456, %v2071, 0.0
        %v2474 = vsel %vm2456, %v2074, 0.0
        %v2475 = vsel %vm2456, %v2079, 0.0
        %v2476 = vsel %vm2456, %v2082, 0.0
        %v2477 = vsel %vm2456, %v2087, 0.0
        %v2478 = vsel %vm2456, %v2090, 0.0
        %v2479 = vsel %vm2456, %v2095, 0.0
        %v2480 = vsel %vm2456, %v2098, 0.0
        %v2481 = vsel %vm2456, %v2103, 0.0
        %v2482 = vsel %vm2456, %v2106, 0.0
        %v2483 = vsel %vm2456, %v2111, 0.0
        %v2484 = vsel %vm2456, %v2114, 0.0
        %v2485 = vsel %vm2456, %v2119, 0.0
        %v2486 = vsel %vm2456, %v2122, 0.0
        %v2487 = vsel %vm2456, %v2127, 0.0
        %v2488 = vsel %vm2456, %v2130, 0.0
        %v2489 = vsel %vm2135, %v2424, %v2457
        %v2490 = vsel %vm2135, %v2425, %v2458
        %v2491 = vsel %vm2135, %v2426, %v2459
        %v2492 = vsel %vm2135, %v2427, %v2460
        %v2493 = vsel %vm2135, %v2428, %v2461
        %v2494 = vsel %vm2135, %v2429, %v2462
        %v2495 = vsel %vm2135, %v2430, %v2463
        %v2496 = vsel %vm2135, %v2431, %v2464
        %v2497 = vsel %vm2135, %v2432, %v2465
        %v2498 = vsel %vm2135, %v2433, %v2466
        %v2499 = vsel %vm2135, %v2434, %v2467
        %v2500 = vsel %vm2135, %v2435, %v2468
        %v2501 = vsel %vm2135, %v2436, %v2469
        %v2502 = vsel %vm2135, %v2437, %v2470
        %v2503 = vsel %vm2135, %v2438, %v2471
        %v2504 = vsel %vm2135, %v2439, %v2472
        %v2505 = vsel %vm2135, %v2440, %v2473
        %v2506 = vsel %vm2135, %v2441, %v2474
        %v2507 = vsel %vm2135, %v2442, %v2475
        %v2508 = vsel %vm2135, %v2443, %v2476
        %v2509 = vsel %vm2135, %v2444, %v2477
        %v2510 = vsel %vm2135, %v2445, %v2478
        %v2511 = vsel %vm2135, %v2446, %v2479
        %v2512 = vsel %vm2135, %v2447, %v2480
        %v2513 = vsel %vm2135, %v2448, %v2481
        %v2514 = vsel %vm2135, %v2449, %v2482
        %v2515 = vsel %vm2135, %v2450, %v2483
        %v2516 = vsel %vm2135, %v2451, %v2484
        %v2517 = vsel %vm2135, %v2452, %v2485
        %v2518 = vsel %vm2135, %v2453, %v2486
        %v2519 = vsel %vm2135, %v2454, %v2487
        %v2520 = vsel %vm2135, %v2455, %v2488
        %2521 = vst [vmem:[%s356] sm:$0xff] %v2489
        %2522 = vst [vmem:[%s356 + $0x8] sm:$0xff] %v2490
        %2523 = vst [vmem:[%s356 + $0x10] sm:$0xff] %v2491
        %2524 = vst [vmem:[%s356 + $0x18] sm:$0xff] %v2492
        %2525 = vst [vmem:[%s356 + $0x20] sm:$0xff] %v2493
        %2526 = vst [vmem:[%s356 + $0x28] sm:$0xff] %v2494
        %2527 = vst [vmem:[%s356 + $0x30] sm:$0xff] %v2495
        %2528 = vst [vmem:[%s356 + $0x38] sm:$0xff] %v2496
        %2529 = vst [vmem:[%s356 + $0x40] sm:$0xff] %v2497
        %2530 = vst [vmem:[%s356 + $0x48] sm:$0xff] %v2498
        %2531 = vst [vmem:[%s356 + $0x50] sm:$0xff] %v2499
        %2532 = vst [vmem:[%s356 + $0x58] sm:$0xff] %v2500
        %2533 = vst [vmem:[%s356 + $0x60] sm:$0xff] %v2501
        %2534 = vst [vmem:[%s356 + $0x68] sm:$0xff] %v2502
        %2535 = vst [vmem:[%s356 + $0x70] sm:$0xff] %v2503
        %2536 = vst [vmem:[%s356 + $0x78] sm:$0xff] %v2504
        %2537 = vst [vmem:[%s356 + $0x80] sm:$0xff] %v2505
        %2538 = vst [vmem:[%s356 + $0x88] sm:$0xff] %v2506
        %2539 = vst [vmem:[%s356 + $0x90] sm:$0xff] %v2507
        %2540 = vst [vmem:[%s356 + $0x98] sm:$0xff] %v2508
        %2541 = vst [vmem:[%s356 + $0xa0] sm:$0xff] %v2509
        %2542 = vst [vmem:[%s356 + $0xa8] sm:$0xff] %v2510
        %2543 = vst [vmem:[%s356 + $0xb0] sm:$0xff] %v2511
        %2544 = vst [vmem:[%s356 + $0xb8] sm:$0xff] %v2512
        %2545 = vst [vmem:[%s356 + $0xc0] sm:$0xff] %v2513
        %2546 = vst [vmem:[%s356 + $0xc8] sm:$0xff] %v2514
        %2547 = vst [vmem:[%s356 + $0xd0] sm:$0xff] %v2515
        %2548 = vst [vmem:[%s356 + $0xd8] sm:$0xff] %v2516
        %2549 = vst [vmem:[%s356 + $0xe0] sm:$0xff] %v2517
        %2550 = vst [vmem:[%s356 + $0xe8] sm:$0xff] %v2518
        %2551 = vst [vmem:[%s356 + $0xf0] sm:$0xff] %v2519
        %2552 = vst [vmem:[%s356 + $0xf8] sm:$0xff] %v2520
        %s2553 = sand.u32 %s227, 1
        %s2554 = scalar_lea.sflag [#allocation4], %s2553
        %s2555 = sand.u32 %s227, 1
        %s2556 = smul.addr %s2555, 256
        %s2557 = scalar_lea.vmem [#allocation7], %s2556
        // Predicated region
        $region65: #{tpu_custom_call.1} parent=55 // pred_check
          %p2558 = pneg %p237
        $region66: #{tpu_custom_call.1} parent=55 // pred_check_branch
          %2560 = sbr.rel (%p2558) target = $region68
        $region67: #{tpu_custom_call.1} parent=55 // pred_region
          %s2561 = smul.u32 32, %s25
          %s2563 = ssub.s32 4096, 4096
          %2564 = vsyncadd %s2554, %s2563
          %s2565 = smul.addr %s2561, 128
          %s2566 = scalar_lea.hbm %s9, %s2565
          %s2567 = sshll.u32 %s2557, 4
          %s2568 = int_to_ptr.vmem [resolvable:$true] %s2567
          %2573 = dma.vmem_to_hbm [thread:$0]  %s2568, 4096, %s2566, %s2554, 128, 128, 8
        $region68: #{tpu_custom_call.1} parent=55 // pred_fallthru
          _
      $region56: #{tpu_custom_call.1} parent=5 // pred_fallthru
        _
      %p2574 = scmp.le.s32.totalorder 2, %s20
      // Predicated region
      $region69: #{tpu_custom_call.1} parent=5 // pred_check
        %p2575 = pneg %p2574
      $region70: #{tpu_custom_call.1} parent=5 // pred_check_branch
        %2577 = sbr.rel (%p2575) target = $region72
      $region71: #{tpu_custom_call.1} parent=5 // pred_region
        %s2578 = ssub.s32 %s20, 2
        // Predicated region
        $region73: #{tpu_custom_call.1} parent=71 // pred_check
          %p2579 = pneg %p243
        $region74: #{tpu_custom_call.1} parent=71 // pred_check_branch
          %2581 = sbr.rel (%p2579) target = $region76
        $region75: #{tpu_custom_call.1} parent=71 // pred_region
          %s2582 = sand.u32 %s228, 1
          %s2583 = scalar_lea.sflag [#allocation4], %s2582
          %s2584 = sand.u32 %s228, 1
          %s2585 = smul.addr %s2584, 256
          %s2586 = scalar_lea.vmem [#allocation7], %s2585
          %2587 = dma.done %s2583, 4096
        $region76: #{tpu_custom_call.1} parent=71 // pred_fallthru
          _
      $region72: #{tpu_custom_call.1} parent=5 // pred_fallthru
        _
    $region6: #{tpu_custom_call.1} parent=1 // loop_footer
      %s24 = sadd.s32 1, %s20
    $region7: #{tpu_custom_call.1} parent=1 // loop_footer_branch
      %19 = sbr.rel target = $region3
    $region8: #{tpu_custom_call.1} parent=1 // loop_exit
      _
    %2588 = vsyncpa [#allocation3], 1
    %s2589 = scalar_lea.sflag [#allocation3], 1
    %2590 = vsyncpa %s2589, 1
    %2591 = vsyncpa [#allocation6], 1
    %2592 = vsyncpa [#allocation4], 1
    %s2593 = scalar_lea.sflag [#allocation4], 1
    %2594 = vsyncpa %s2593, 1

</llo_original>
